<compile_context>
chip_gen: v7x
topology: tpu7x:2x2x1
jax: 0.10.0
libtpu: 0.0.40
codegen_flags: <defaults>
</compile_context>

<pallas_src>
import functools

import jax
import jax.numpy as jnp
from jax.experimental import pallas as pl
from jax.experimental.pallas import tpu as pltpu

_VMEM_LIMIT = 32 * 1024 * 1024  # safe on v5e/v6e/v7x; raise on v5e/v6e for bigger tiles


# ---------------------------------------------------------------------------
# Kernel helpers
# ---------------------------------------------------------------------------
def _depthwise3x3(x, dw, d, out_rows, s):
    """3x3 depthwise conv (dilation d, H-stride s) on a VMEM slab.

    x : (R, W, C) f32 slab that already contains the H halo rows (all finite).
    dw: (3, 3, C) f32 depthwise weights (BN scale folded in).
    W-direction zero padding is handled by pltpu.roll (XLU) with the column
    mask folded into the tap weights, so NO full-slab selects are needed.
    Returns (out_rows, W, C) f32.
    """
    R, W, C = x.shape
    col = jax.lax.broadcasted_iota(jnp.int32, (1, W, 1), 1)
    mask_l = (col >= d).astype(jnp.float32)        # valid cols for the left tap
    mask_r = (col < W - d).astype(jnp.float32)     # valid cols for the right tap
    acc = None
    for kw in range(3):
        if kw == 0:
            sh = pltpu.roll(x, d, 1)               # sh[:, j] = x[:, j - d] (wrap)
            cmask = mask_l
        elif kw == 1:
            sh = x
            cmask = None
        else:
            sh = pltpu.roll(x, W - d, 1)           # sh[:, j] = x[:, j + d] (wrap)
            cmask = mask_r
        for kh in range(3):
            w = dw[kh, kw]                                        # (C,)
            w_eff = w * cmask if cmask is not None else w         # (1,W,C)/(C,)
            if s == 1:
                tap = sh[kh * d: kh * d + out_rows]
            else:
                tap = sh[kh * d: kh * d + out_rows * s]
                tap = tap.reshape(out_rows, s, W, C)[:, 0]
            term = tap * w_eff
            acc = term if acc is None else acc + term             # first-tap init
    return acc


def _sepchain_kernel(*refs, H_img, TH_out, W, dils, stride, activate_first,
                     res_mode):
    """One or two fused SeparableConv2d stages on a row tile (+ fused residual).

    refs (in order):
      x_mid                        (1, TH_out*stride, W, C0)
      top halo rows (sum(dils) x)  (1, 1, W, C0) each
      bottom halo rows (sum(dils)) (1, 1, W, C0) each
      per stage: dw (3,3,Ci) f32 [scale folded], b1 (1,Ci),
                 pw (Ci,Co) bf16 [scale folded], b2 (1,Co)
      res_mode 1: res tile (1, TH_out, W, Cout)               [stride 1 only]
      res_mode 2: x tile (1, TH_out*stride, W, Cri), w_skip (Cri,Cout) bf16,
                  b_skip (1,Cout)                              [strided fused too]
      out tile                     (1, TH_out, W//stride, Cout)
    """
    nstage = len(dils)
    hd = int(sum(dils))
    TH_s = TH_out * stride
    Wo = W // stride          # W is padded to a stride multiple by the wrapper

    idx = 0
    x_mid = refs[idx]; idx += 1
    tops = refs[idx: idx + hd]; idx += hd
    bots = refs[idx: idx + hd]; idx += hd
    stages = []
    for _ in range(nstage):
        stages.append(refs[idx: idx + 4]); idx += 4
    if res_mode == 1:
        res_ref = refs[idx]; idx += 1
    elif res_mode == 2:
        xres_ref, wsk_ref, bsk_ref = refs[idx: idx + 3]; idx += 3
    o_ref = refs[-1]

    t = pl.program_id(1)
    row0 = t * TH_s                       # first image row of the mid block

    # Assemble the input slab.  Halo rows are 1-row blocks with clamped
    # index_maps; rows that fall outside the image are zeroed HERE with a
    # per-row scalar select (negligible) instead of a full-slab mask.
    parts = []
    for k in range(hd, 0, -1):                                   # rows row0-hd .. row0-1
        r = tops[hd - k][0].astype(jnp.float32)
        parts.append(jnp.where(row0 - k >= 0, r, 0.0))
    parts.append(x_mid[0].astype(jnp.float32))                   # always in-bounds
    for j in range(hd):                                          # rows row0+TH_s .. +hd-1
        r = bots[j][0].astype(jnp.float32)
        parts.append(jnp.where(row0 + TH_s + j < H_img, r, 0.0))
    cur = jnp.concatenate(parts, axis=0)
    # TODO(synk): coalesce the 2*hd 1-row halo DMAs / drop the concat with an
    # overlapping-window input block.

    h_rem = hd
    for i in range(nstage):
        d = dils[i]
        dw_ref, b1_ref, pw_ref, b2_ref = stages[i]
        is_last = (i == nstage - 1)
        s = stride if is_last else 1
        R = cur.shape[0]

        if i > 0:
            # The previous stage's output on rows outside the image is not zero
            # (bias / relu); re-zero so this stage sees zero padding.  Only the
            # first/last h_rem rows can be OOB; interior tiles pass through.
            row = row0 - h_rem + jax.lax.broadcasted_iota(jnp.int32, (R, 1, 1), 0)
            cur = jnp.where((row >= 0) & (row < H_img), cur, 0.0)

        if activate_first:
            cur = jnp.maximum(cur, 0.0)                          # relu0

        out_rows = TH_out if is_last else (R - 2 * d)
        acc = _depthwise3x3(cur, dw_ref[...].astype(jnp.float32), d, out_rows, s)
        wcols = W
        if s > 1:                                                # fused W stride
            acc = acc.reshape(out_rows, Wo, s, acc.shape[-1])[:, :, 0, :]
            wcols = Wo
        y = acc + b1_ref[0]                                      # bn1 (scale folded)
        if not activate_first:
            y = jnp.maximum(y, 0.0)                              # relu1

        cout = pw_ref.shape[-1]
        # TODO(synk): W is not always a sublane multiple; padding W to 8 would
        # remove the relayout this reshape can cost around the matmul.
        z = jnp.dot(y.reshape(out_rows * wcols, y.shape[-1]).astype(jnp.bfloat16),
                    pw_ref[...], preferred_element_type=jnp.float32)
        z = z + b2_ref[0]                                        # bn2 (scale folded)
        if not activate_first:
            z = jnp.maximum(z, 0.0)                              # relu2
        cur = z.reshape(out_rows, wcols, cout)
        h_rem -= d

    if res_mode == 1:                                            # identity skip
        cur = cur + res_ref[0].astype(jnp.float32)
    elif res_mode == 2:                                          # fused 1x1 skip + BN
        cri = xres_ref.shape[-1]
        xs = xres_ref[0]
        if stride > 1:                                           # fused strided skip
            xs = xs.reshape(TH_out, stride, W, cri)[:, 0]
            xs = xs.reshape(TH_out, Wo, stride, cri)[:, :, 0, :]
        sk = jnp.dot(xs.reshape(TH_out * Wo, cri).astype(jnp.bfloat16),
                     wsk_ref[...], preferred_element_type=jnp.float32)
        sk = sk + bsk_ref[0]
        cur = cur + sk.reshape(TH_out, Wo, -1)

    o_ref[0] = cur.astype(o_ref.dtype)


# ---------------------------------------------------------------------------
# pallas_call wrapper
# ---------------------------------------------------------------------------
def _pick_rows(total, cap):
    # NOTE(v7x): with N==1 prefer a divisor giving an even number of tiles so
    # both TensorCores get balanced work.
    cap = int(max(1, min(cap, total)))
    for r in range(cap, 0, -1):
        if total % r == 0:
            return r
    return 1


def _sepchain_pallas(x, stages, *, dils, activate_first, stride=1,
                     residual=None, tile_rows=16,
                     vmem_limit_bytes=_VMEM_LIMIT):
    """Run a chain of 1 or 2 fused SeparableConv2d stages, row-tiled over H.

    For stride != 1 (single-stage chains only) the H/W strides and the
    1x1-conv+BN skip are applied inside the kernel.
    """
    N, H, W, C0 = x.shape
    nstage = len(stages)
    hd = int(sum(dils))
    assert nstage in (1, 2)
    assert stride == 1 or nstage == 1
    C_last = stages[-1][2].shape[-1]

    # Output spatial dims (PyTorch ceil semantics for strided conv, pad=dil).
    Ho = -(-H // stride)
    Wo = -(-W // stride)
    Hp, Wp = Ho * stride, Wo * stride

    xres = None
    if residual is not None and residual[0] == "conv":
        xres = residual[1]
    if (Hp, Wp) != (H, W):
        # TODO(synk): handle the remainder rows/cols with partial edge blocks
        # inside the kernel instead of this one-time zero pad in HBM.
        pad = ((0, 0), (0, Hp - H), (0, Wp - W), (0, 0))
        x = jnp.pad(x, pad)
        if xres is not None:
            xres = jnp.pad(xres, pad)

    TH_out = _pick_rows(Ho, max(1, tile_rows // stride))
    TH_s = TH_out * stride
    nT = Ho // TH_out

    in_specs = [pl.BlockSpec((1, TH_s, Wp, C0), lambda n, t: (n, t, 0, 0))]
    args = [x]
    # Halo rows (1-row blocks, clamped index_map; per-row masked in-kernel).
    for k in range(hd, 0, -1):                                   # rows t*TH_s - hd .. -1
        in_specs.append(pl.BlockSpec(
            (1, 1, Wp, C0),
            lambda n, t, k=k: (n, jnp.maximum(t * TH_s - k, 0), 0, 0)))
        args.append(x)
    for j in range(hd):                                          # rows (t+1)*TH_s .. +hd-1
        in_specs.append(pl.BlockSpec(
            (1, 1, Wp, C0),
            lambda n, t, j=j: (n, jnp.minimum((t + 1) * TH_s + j, Hp - 1), 0, 0)))
        args.append(x)

    # Weights: constant index_map -> resident in VMEM across all grid steps.
    # TODO(synk): pipeline_mode=pl.Buffered(1) would single-buffer them.
    for (dw, b1, pw, b2) in stages:
        Ci, Co = dw.shape[-1], pw.shape[-1]
        in_specs += [
            pl.BlockSpec((3, 3, Ci), lambda n, t: (0, 0, 0)),
            pl.BlockSpec((1, Ci), lambda n, t: (0, 0)),
            pl.BlockSpec((Ci, Co), lambda n, t: (0, 0)),
            pl.BlockSpec((1, Co), lambda n, t: (0, 0)),
        ]
        args += [dw, b1, pw, b2]

    res_mode = 0
    if residual is not None:
        if residual[0] == "identity":
            assert stride == 1
            res_mode = 1
            in_specs.append(
                pl.BlockSpec((1, TH_out, Wp, C_last), lambda n, t: (n, t, 0, 0)))
            args.append(residual[1])
        else:                                                    # fused conv skip
            res_mode = 2
            wsk, bsk = residual[2], residual[3]
            Cri = xres.shape[-1]
            in_specs += [
                pl.BlockSpec((1, TH_s, Wp, Cri), lambda n, t: (n, t, 0, 0)),
                pl.BlockSpec((Cri, C_last), lambda n, t: (0, 0)),
                pl.BlockSpec((1, C_last), lambda n, t: (0, 0)),
            ]
            args += [xres, wsk, bsk]

    kernel = functools.partial(
        _sepchain_kernel, H_img=Hp, TH_out=TH_out, W=Wp,
        dils=tuple(int(d) for d in dils), stride=int(stride),
        activate_first=bool(activate_first), res_mode=res_mode)

    return pl.pallas_call(
        kernel,
        out_shape=jax.ShapeDtypeStruct((N, Ho, Wo, C_last), x.dtype),
        grid=(N, nT),
        in_specs=in_specs,
        out_specs=pl.BlockSpec((1, TH_out, Wo, C_last), lambda n, t: (n, t, 0, 0)),
        compiler_params=pltpu.CompilerParams(
            dimension_semantics=("parallel", "parallel"),
            vmem_limit_bytes=vmem_limit_bytes),
    )(*args)


# ---------------------------------------------------------------------------
# Parameter prep (fold BN, bf16 MXU feed) and Block forward
# ---------------------------------------------------------------------------
def prepare_block_params(params):
    def prep_sep(p):
        dw, s1, b1, pw, s2, b2 = p
        cin, cout = dw.shape[-1], pw.shape[-1]
        dw_eff = (dw * s1).astype(jnp.float32)                 # fold bn1 scale
        pw_eff = (pw * s2[None, :]).astype(jnp.bfloat16)       # fold bn2 scale, bf16 feed
        return (dw_eff, b1.reshape(1, cin).astype(jnp.float32),
                pw_eff, b2.reshape(1, cout).astype(jnp.float32))

    prep = {k: prep_sep(params[k]) for k in ("sep1", "sep2", "sep3")}
    if params["skip"] is not None:
        w, s, b = params["skip"]
        cout = w.shape[-1]
        prep["skip"] = ((w * s[None, :]).astype(jnp.bfloat16),
                        b.reshape(1, cout).astype(jnp.float32))
    else:
        prep["skip"] = None
    return prep


def block_forward_nhwc(x, params, *, strides=1, atrous=(1, 1, 1),
                       activate_first=True, tile_rows=16,
                       vmem_limit_bytes=_VMEM_LIMIT):
    """Forward pass of Block in NHWC. Returns (out_nhwc, hook_layer_nhwc)."""
    if isinstance(atrous, int):
        atrous = (atrous,) * 3
    prep = prepare_block_params(params)

    # sepconv1 + sepconv2 fused into one kernel (hook = sepconv2 output).
    hook = _sepchain_pallas(x, [prep["sep1"], prep["sep2"]],
                            dils=atrous[:2], activate_first=activate_first,
                            tile_rows=tile_rows,
                            vmem_limit_bytes=vmem_limit_bytes)

    if prep["skip"] is None:
        assert strides == 1
        residual = ("identity", x)
    else:
        wsk, bsk = prep["skip"]
        residual = ("conv", x, wsk, bsk)

    # sepconv3 with the residual add fused; for strides != 1 the H/W strides
    # and the 1x1-conv skip are applied inside the kernel as well.
    out = _sepchain_pallas(hook, [prep["sep3"]], dils=atrous[2:3],
                           activate_first=activate_first, stride=strides,
                           residual=residual, tile_rows=tile_rows,
                           vmem_limit_bytes=vmem_limit_bytes)
    return out, hook


def block_forward(x_nchw, params, *, strides=1, atrous=(1, 1, 1),
                  activate_first=True, tile_rows=16,
                  vmem_limit_bytes=_VMEM_LIMIT):
    """NCHW wrapper matching the PyTorch module interface."""
    x = jnp.transpose(x_nchw, (0, 2, 3, 1))                    # NCHW -> NHWC
    out, hook = block_forward_nhwc(x, params, strides=strides, atrous=atrous,
                                   activate_first=activate_first,
                                   tile_rows=tile_rows,
                                   vmem_limit_bytes=vmem_limit_bytes)
    return jnp.transpose(out, (0, 3, 1, 2)), jnp.transpose(hook, (0, 3, 1, 2))


# ---------------------------------------------------------------------------
# Deterministic parameter init (BN folded to eval-mode scale/bias)
# ---------------------------------------------------------------------------
def init_block_params(key, in_filters, out_filters, strides=1, grow_first=True):
    eps = 1e-5
    keys = iter(jax.random.split(key, 64))

    def bn(c):
        gamma = jax.random.uniform(next(keys), (c,), jnp.float32, 0.5, 1.5)
        beta = jax.random.uniform(next(keys), (c,), jnp.float32, -0.1, 0.1)
        mean = jax.random.uniform(next(keys), (c,), jnp.float32, -0.1, 0.1)
        var = jax.random.uniform(next(keys), (c,), jnp.float32, 0.8, 1.2)
        scale = gamma / jnp.sqrt(var + eps)
        bias = beta - mean * scale
        return scale, bias

    def sep(cin, cout):
        dw = jax.random.normal(next(keys), (3, 3, cin), jnp.float32) * 0.2
        s1, b1 = bn(cin)
        pw = jax.random.normal(next(keys), (cin, cout), jnp.float32) * 0.2
        s2, b2 = bn(cout)
        return (dw, s1, b1, pw, s2, b2)

    params = {}
    if out_filters != in_filters or strides != 1:
        w = jax.random.normal(next(keys), (in_filters, out_filters),
                              jnp.float32) * 0.2
        s, b = bn(out_filters)
        params["skip"] = (w, s, b)
    else:
        params["skip"] = None

    filters = out_filters if grow_first else in_filters
    params["sep1"] = sep(in_filters, filters)
    params["sep2"] = sep(filters, out_filters)
    params["sep3"] = sep(out_filters, out_filters)
    return params


# ---------------------------------------------------------------------------
# Pure-JAX reference mirroring the kernel math (folded BN, bf16 MXU operands)
# ---------------------------------------------------------------------------
def _sepconv_ref(x, stage, *, dilation, activate_first):
    dw_eff, b1, pw_bf16, b2 = stage
    d = dilation
    if activate_first:
        x = jnp.maximum(x, 0.0)
    N, H, W, C = x.shape
    xp = jnp.pad(x, ((0, 0), (d, d), (d, d), (0, 0)))
    acc = jnp.zeros((N, H, W, C), jnp.float32)
    for kw in range(3):
        for kh in range(3):
            acc = acc + xp[:, kh * d:kh * d + H, kw * d:kw * d + W, :] * dw_eff[kh, kw]
    y = acc + b1
    if not activate_first:
        y = jnp.maximum(y, 0.0)
    yb = y.astype(jnp.bfloat16).astype(jnp.float32)
    z = jnp.einsum("nhwc,co->nhwo", yb, pw_bf16.astype(jnp.float32)) + b2
    if not activate_first:
        z = jnp.maximum(z, 0.0)
    return z


def _block_ref(x_nhwc, prep, strides, atrous, activate_first):
    y = _sepconv_ref(x_nhwc, prep["sep1"], dilation=atrous[0],
                     activate_first=activate_first)
    hook = _sepconv_ref(y, prep["sep2"], dilation=atrous[1],
                        activate_first=activate_first)
    z = _sepconv_ref(hook, prep["sep3"], dilation=atrous[2],
                     activate_first=activate_first)
    z = z[:, ::strides, ::strides, :]
    xs = x_nhwc[:, ::strides, ::strides, :]
    if prep["skip"] is None:
        skip = xs
    else:
        w_bf16, b = prep["skip"]
        skip = jnp.einsum("nhwc,co->nhwo",
                          xs.astype(jnp.bfloat16).astype(jnp.float32),
                          w_bf16.astype(jnp.float32)) + b
    return z + skip, hook


# ---------------------------------------------------------------------------
if __name__ == "__main__":
    key = jax.random.PRNGKey(0)
    N = 2

    configs = [
        # (name, Cin, Cout, strides, atrous, activate_first, H, W)
        ("s1_grow", 8, 16, 1, (1, 1, 1), True, 16, 16),    # conv skip fused into sep3
        ("s1_identity", 16, 16, 1, (2, 2, 2), False, 16, 16),  # identity skip, dilation 2
        ("s2_down", 8, 16, 2, (1, 1, 1), True, 16, 16),    # fully fused strided sep3
        ("s2_odd", 8, 16, 2, (1, 1, 1), True, 17, 17),     # odd H/W -> ceil output dims
    ]

    for i, (name, cin, cout, strides, atrous, act_first, H, W) in enumerate(configs):
        kx, kp = jax.random.split(jax.random.fold_in(key, i))
        x = jax.random.normal(kx, (N, cin, H, W), jnp.float32)   # NCHW like PyTorch
        params = init_block_params(kp, cin, cout, strides=strides, grow_first=True)

        out, hook = block_forward(x, params, strides=strides, atrous=atrous,
                                  activate_first=act_first, tile_rows=8)
        out = jax.block_until_ready(out)
        hook = jax.block_until_ready(hook)

        x_nhwc = jnp.transpose(x, (0, 2, 3, 1))
        prep = prepare_block_params(params)
        ref_out, ref_hook = _block_ref(x_nhwc, prep, strides, atrous, act_first)
        ref_out = jnp.transpose(ref_out, (0, 3, 1, 2))
        ref_hook = jnp.transpose(ref_hook, (0, 3, 1, 2))

        Ho, Wo = -(-H // strides), -(-W // strides)
        assert out.shape == (N, cout, Ho, Wo), (name, out.shape)
        assert hook.shape == (N, cout, H, W), (name, hook.shape)
        err_o = float(jnp.max(jnp.abs(out - ref_out)))
        err_h = float(jnp.max(jnp.abs(hook - ref_hook)))
        assert err_o < 2e-3 and err_h < 2e-3, (name, err_o, err_h)

    print("KERNEL_OK")
</pallas_src>

<mosaic_0001>
module attributes {stable_mosaic.version = 11 : i64} {
  func.func @_sepchain_kernel(%arg0: i32, %arg1: i32, %arg2: memref<1x8x16x8xf32, #tpu.memory_space<vmem>>, %arg3: memref<1x1x16x8xf32, #tpu.memory_space<vmem>>, %arg4: memref<1x1x16x8xf32, #tpu.memory_space<vmem>>, %arg5: memref<1x1x16x8xf32, #tpu.memory_space<vmem>>, %arg6: memref<1x1x16x8xf32, #tpu.memory_space<vmem>>, %arg7: memref<3x3x8xf32, #tpu.memory_space<vmem>>, %arg8: memref<1x8xf32, #tpu.memory_space<vmem>>, %arg9: memref<8x16xbf16, #tpu.memory_space<vmem>>, %arg10: memref<1x16xf32, #tpu.memory_space<vmem>>, %arg11: memref<3x3x16xf32, #tpu.memory_space<vmem>>, %arg12: memref<1x16xf32, #tpu.memory_space<vmem>>, %arg13: memref<16x16xbf16, #tpu.memory_space<vmem>>, %arg14: memref<1x16xf32, #tpu.memory_space<vmem>>, %arg15: memref<1x8x16x16xf32, #tpu.memory_space<vmem>>) attributes {dimension_semantics = [#tpu.dimension_semantics<parallel>, #tpu.dimension_semantics<parallel>], iteration_bounds = array<i64: 2, 2>, scalar_prefetch = 0 : i64, scratch_operands = 0 : i64, tpu.core_type = #tpu.core_type<tc>, window_params = [{transform_indices = @transform_0, window_bounds = array<i64: 1, 8, 16, 8>}, {transform_indices = @transform_1, window_bounds = array<i64: 1, 1, 16, 8>}, {transform_indices = @transform_2, window_bounds = array<i64: 1, 1, 16, 8>}, {transform_indices = @transform_3, window_bounds = array<i64: 1, 1, 16, 8>}, {transform_indices = @transform_4, window_bounds = array<i64: 1, 1, 16, 8>}, {pipeline_mode = #tpu.pipeline_mode<synchronous>, transform_indices = @transform_5, window_bounds = array<i64: 3, 3, 8>}, {pipeline_mode = #tpu.pipeline_mode<synchronous>, transform_indices = @transform_6, window_bounds = array<i64: 1, 8>}, {pipeline_mode = #tpu.pipeline_mode<synchronous>, transform_indices = @transform_7, window_bounds = array<i64: 8, 16>}, {pipeline_mode = #tpu.pipeline_mode<synchronous>, transform_indices = @transform_8, window_bounds = array<i64: 1, 16>}, {pipeline_mode = #tpu.pipeline_mode<synchronous>, transform_indices = @transform_9, window_bounds = array<i64: 3, 3, 16>}, {pipeline_mode = #tpu.pipeline_mode<synchronous>, transform_indices = @transform_10, window_bounds = array<i64: 1, 16>}, {pipeline_mode = #tpu.pipeline_mode<synchronous>, transform_indices = @transform_11, window_bounds = array<i64: 16, 16>}, {pipeline_mode = #tpu.pipeline_mode<synchronous>, transform_indices = @transform_12, window_bounds = array<i64: 1, 16>}, {transform_indices = @transform_13, window_bounds = array<i64: 1, 8, 16, 16>}]} {
    %c8_i32 = arith.constant 8 : i32
    %0 = arith.muli %arg1, %c8_i32 : i32
    %c0 = arith.constant 0 : index
    %c0_0 = arith.constant 0 : index
    %c0_1 = arith.constant 0 : index
    %c0_2 = arith.constant 0 : index
    %1 = vector.load %arg3[%c0, %c0_0, %c0_1, %c0_2] : memref<1x1x16x8xf32, #tpu.memory_space<vmem>>, vector<1x1x16x8xf32>
    %2 = vector.shape_cast %1 : vector<1x1x16x8xf32> to vector<1x16x8xf32>
    %c2_i32 = arith.constant 2 : i32
    %3 = arith.subi %0, %c2_i32 : i32
    %c0_i32 = arith.constant 0 : i32
    %4 = arith.cmpi sge, %3, %c0_i32 : i32
    %cst = arith.constant 0.000000e+00 : f32
    %5 = vector.broadcast %cst : f32 to vector<1x16x8xf32>
    %6 = arith.select %4, %2, %5 : vector<1x16x8xf32>
    %c0_3 = arith.constant 0 : index
    %c0_4 = arith.constant 0 : index
    %c0_5 = arith.constant 0 : index
    %c0_6 = arith.constant 0 : index
    %7 = vector.load %arg4[%c0_3, %c0_4, %c0_5, %c0_6] : memref<1x1x16x8xf32, #tpu.memory_space<vmem>>, vector<1x1x16x8xf32>
    %8 = vector.shape_cast %7 : vector<1x1x16x8xf32> to vector<1x16x8xf32>
    %c1_i32 = arith.constant 1 : i32
    %9 = arith.subi %0, %c1_i32 : i32
    %c0_i32_7 = arith.constant 0 : i32
    %10 = arith.cmpi sge, %9, %c0_i32_7 : i32
    %cst_8 = arith.constant 0.000000e+00 : f32
    %11 = vector.broadcast %cst_8 : f32 to vector<1x16x8xf32>
    %12 = arith.select %10, %8, %11 : vector<1x16x8xf32>
    %c0_9 = arith.constant 0 : index
    %c0_10 = arith.constant 0 : index
    %c0_11 = arith.constant 0 : index
    %c0_12 = arith.constant 0 : index
    %13 = vector.load %arg2[%c0_9, %c0_10, %c0_11, %c0_12] : memref<1x8x16x8xf32, #tpu.memory_space<vmem>>, vector<1x8x16x8xf32>
    %14 = vector.shape_cast %13 : vector<1x8x16x8xf32> to vector<8x16x8xf32>
    %c0_13 = arith.constant 0 : index
    %c0_14 = arith.constant 0 : index
    %c0_15 = arith.constant 0 : index
    %c0_16 = arith.constant 0 : index
    %15 = vector.load %arg5[%c0_13, %c0_14, %c0_15, %c0_16] : memref<1x1x16x8xf32, #tpu.memory_space<vmem>>, vector<1x1x16x8xf32>
    %16 = vector.shape_cast %15 : vector<1x1x16x8xf32> to vector<1x16x8xf32>
    %c8_i32_17 = arith.constant 8 : i32
    %17 = arith.addi %0, %c8_i32_17 : i32
    %c0_i32_18 = arith.constant 0 : i32
    %18 = arith.addi %17, %c0_i32_18 : i32
    %c16_i32 = arith.constant 16 : i32
    %19 = arith.cmpi slt, %18, %c16_i32 : i32
    %cst_19 = arith.constant 0.000000e+00 : f32
    %20 = vector.broadcast %cst_19 : f32 to vector<1x16x8xf32>
    %21 = arith.select %19, %16, %20 : vector<1x16x8xf32>
    %c0_20 = arith.constant 0 : index
    %c0_21 = arith.constant 0 : index
    %c0_22 = arith.constant 0 : index
    %c0_23 = arith.constant 0 : index
    %22 = vector.load %arg6[%c0_20, %c0_21, %c0_22, %c0_23] : memref<1x1x16x8xf32, #tpu.memory_space<vmem>>, vector<1x1x16x8xf32>
    %23 = vector.shape_cast %22 : vector<1x1x16x8xf32> to vector<1x16x8xf32>
    %c8_i32_24 = arith.constant 8 : i32
    %24 = arith.addi %0, %c8_i32_24 : i32
    %c1_i32_25 = arith.constant 1 : i32
    %25 = arith.addi %24, %c1_i32_25 : i32
    %c16_i32_26 = arith.constant 16 : i32
    %26 = arith.cmpi slt, %25, %c16_i32_26 : i32
    %cst_27 = arith.constant 0.000000e+00 : f32
    %27 = vector.broadcast %cst_27 : f32 to vector<1x16x8xf32>
    %28 = arith.select %26, %23, %27 : vector<1x16x8xf32>
    %29 = tpu.concatenate %6, %12, %14, %21, %28 in 0 : vector<1x16x8xf32>, vector<1x16x8xf32>, vector<8x16x8xf32>, vector<1x16x8xf32>, vector<1x16x8xf32> -> vector<12x16x8xf32>
    %cst_28 = arith.constant 0.000000e+00 : f32
    %30 = vector.broadcast %cst_28 : f32 to vector<12x16x8xf32>
    %31 = arith.maximumf %29, %30 : vector<12x16x8xf32>
    %c0_29 = arith.constant 0 : index
    %c0_30 = arith.constant 0 : index
    %c0_31 = arith.constant 0 : index
    %32 = vector.load %arg7[%c0_29, %c0_30, %c0_31] : memref<3x3x8xf32, #tpu.memory_space<vmem>>, vector<3x3x8xf32>
    %33 = tpu.iota {dimensions = array<i32: 1>} : vector<1x16x1xi32>
    %c1_i32_32 = arith.constant 1 : i32
    %34 = vector.broadcast %c1_i32_32 : i32 to vector<1x16x1xi32>
    %35 = arith.cmpi sge, %33, %34 : vector<1x16x1xi32>
    %36 = arith.extui %35 : vector<1x16x1xi1> to vector<1x16x1xi32>
    %37 = arith.sitofp %36 : vector<1x16x1xi32> to vector<1x16x1xf32>
    %c15_i32 = arith.constant 15 : i32
    %38 = vector.broadcast %c15_i32 : i32 to vector<1x16x1xi32>
    %39 = arith.cmpi slt, %33, %38 : vector<1x16x1xi32>
    %40 = arith.extui %39 : vector<1x16x1xi1> to vector<1x16x1xi32>
    %41 = arith.sitofp %40 : vector<1x16x1xi32> to vector<1x16x1xf32>
    %c1_i32_33 = arith.constant 1 : i32
    %42 = tpu.dynamic_rotate %31 by %c1_i32_33 dim 1 : vector<12x16x8xf32>, i32 -> vector<12x16x8xf32>
    %43 = vector.extract_strided_slice %32 {offsets = [0, 0, 0], sizes = [1, 1, 8], strides = [1, 1, 1]} : vector<3x3x8xf32> to vector<1x1x8xf32>
    %44 = vector.shape_cast %43 : vector<1x1x8xf32> to vector<8xf32>
    %45 = vector.shape_cast %44 : vector<8xf32> to vector<1x1x8xf32>
    %46 = vector.broadcast %45 : vector<1x1x8xf32> to vector<1x16x8xf32>
    %47 = vector.broadcast %37 : vector<1x16x1xf32> to vector<1x16x8xf32>
    %48 = arith.mulf %46, %47 : vector<1x16x8xf32>
    %49 = vector.extract_strided_slice %42 {offsets = [0, 0, 0], sizes = [10, 16, 8], strides = [1, 1, 1]} : vector<12x16x8xf32> to vector<10x16x8xf32>
    %50 = vector.broadcast %48 : vector<1x16x8xf32> to vector<10x16x8xf32>
    %51 = arith.mulf %49, %50 : vector<10x16x8xf32>
    %52 = vector.extract_strided_slice %32 {offsets = [1, 0, 0], sizes = [1, 1, 8], strides = [1, 1, 1]} : vector<3x3x8xf32> to vector<1x1x8xf32>
    %53 = vector.shape_cast %52 : vector<1x1x8xf32> to vector<8xf32>
    %54 = vector.shape_cast %53 : vector<8xf32> to vector<1x1x8xf32>
    %55 = vector.broadcast %54 : vector<1x1x8xf32> to vector<1x16x8xf32>
    %56 = vector.broadcast %37 : vector<1x16x1xf32> to vector<1x16x8xf32>
    %57 = arith.mulf %55, %56 : vector<1x16x8xf32>
    %58 = vector.extract_strided_slice %42 {offsets = [1, 0, 0], sizes = [10, 16, 8], strides = [1, 1, 1]} : vector<12x16x8xf32> to vector<10x16x8xf32>
    %59 = vector.broadcast %57 : vector<1x16x8xf32> to vector<10x16x8xf32>
    %60 = arith.mulf %58, %59 : vector<10x16x8xf32>
    %61 = arith.addf %51, %60 : vector<10x16x8xf32>
    %62 = vector.extract_strided_slice %32 {offsets = [2, 0, 0], sizes = [1, 1, 8], strides = [1, 1, 1]} : vector<3x3x8xf32> to vector<1x1x8xf32>
    %63 = vector.shape_cast %62 : vector<1x1x8xf32> to vector<8xf32>
    %64 = vector.shape_cast %63 : vector<8xf32> to vector<1x1x8xf32>
    %65 = vector.broadcast %64 : vector<1x1x8xf32> to vector<1x16x8xf32>
    %66 = vector.broadcast %37 : vector<1x16x1xf32> to vector<1x16x8xf32>
    %67 = arith.mulf %65, %66 : vector<1x16x8xf32>
    %68 = vector.extract_strided_slice %42 {offsets = [2, 0, 0], sizes = [10, 16, 8], strides = [1, 1, 1]} : vector<12x16x8xf32> to vector<10x16x8xf32>
    %69 = vector.broadcast %67 : vector<1x16x8xf32> to vector<10x16x8xf32>
    %70 = arith.mulf %68, %69 : vector<10x16x8xf32>
    %71 = arith.addf %61, %70 : vector<10x16x8xf32>
    %72 = vector.extract_strided_slice %32 {offsets = [0, 1, 0], sizes = [1, 1, 8], strides = [1, 1, 1]} : vector<3x3x8xf32> to vector<1x1x8xf32>
    %73 = vector.shape_cast %72 : vector<1x1x8xf32> to vector<8xf32>
    %74 = vector.extract_strided_slice %31 {offsets = [0, 0, 0], sizes = [10, 16, 8], strides = [1, 1, 1]} : vector<12x16x8xf32> to vector<10x16x8xf32>
    %75 = vector.shape_cast %73 : vector<8xf32> to vector<1x1x8xf32>
    %76 = vector.broadcast %75 : vector<1x1x8xf32> to vector<10x16x8xf32>
    %77 = arith.mulf %74, %76 : vector<10x16x8xf32>
    %78 = arith.addf %71, %77 : vector<10x16x8xf32>
    %79 = vector.extract_strided_slice %32 {offsets = [1, 1, 0], sizes = [1, 1, 8], strides = [1, 1, 1]} : vector<3x3x8xf32> to vector<1x1x8xf32>
    %80 = vector.shape_cast %79 : vector<1x1x8xf32> to vector<8xf32>
    %81 = vector.extract_strided_slice %31 {offsets = [1, 0, 0], sizes = [10, 16, 8], strides = [1, 1, 1]} : vector<12x16x8xf32> to vector<10x16x8xf32>
    %82 = vector.shape_cast %80 : vector<8xf32> to vector<1x1x8xf32>
    %83 = vector.broadcast %82 : vector<1x1x8xf32> to vector<10x16x8xf32>
    %84 = arith.mulf %81, %83 : vector<10x16x8xf32>
    %85 = arith.addf %78, %84 : vector<10x16x8xf32>
    %86 = vector.extract_strided_slice %32 {offsets = [2, 1, 0], sizes = [1, 1, 8], strides = [1, 1, 1]} : vector<3x3x8xf32> to vector<1x1x8xf32>
    %87 = vector.shape_cast %86 : vector<1x1x8xf32> to vector<8xf32>
    %88 = vector.extract_strided_slice %31 {offsets = [2, 0, 0], sizes = [10, 16, 8], strides = [1, 1, 1]} : vector<12x16x8xf32> to vector<10x16x8xf32>
    %89 = vector.shape_cast %87 : vector<8xf32> to vector<1x1x8xf32>
    %90 = vector.broadcast %89 : vector<1x1x8xf32> to vector<10x16x8xf32>
    %91 = arith.mulf %88, %90 : vector<10x16x8xf32>
    %92 = arith.addf %85, %91 : vector<10x16x8xf32>
    %c15_i32_34 = arith.constant 15 : i32
    %93 = tpu.dynamic_rotate %31 by %c15_i32_34 dim 1 : vector<12x16x8xf32>, i32 -> vector<12x16x8xf32>
    %94 = vector.extract_strided_slice %32 {offsets = [0, 2, 0], sizes = [1, 1, 8], strides = [1, 1, 1]} : vector<3x3x8xf32> to vector<1x1x8xf32>
    %95 = vector.shape_cast %94 : vector<1x1x8xf32> to vector<8xf32>
    %96 = vector.shape_cast %95 : vector<8xf32> to vector<1x1x8xf32>
    %97 = vector.broadcast %96 : vector<1x1x8xf32> to vector<1x16x8xf32>
    %98 = vector.broadcast %41 : vector<1x16x1xf32> to vector<1x16x8xf32>
    %99 = arith.mulf %97, %98 : vector<1x16x8xf32>
    %100 = vector.extract_strided_slice %93 {offsets = [0, 0, 0], sizes = [10, 16, 8], strides = [1, 1, 1]} : vector<12x16x8xf32> to vector<10x16x8xf32>
    %101 = vector.broadcast %99 : vector<1x16x8xf32> to vector<10x16x8xf32>
    %102 = arith.mulf %100, %101 : vector<10x16x8xf32>
    %103 = arith.addf %92, %102 : vector<10x16x8xf32>
    %104 = vector.extract_strided_slice %32 {offsets = [1, 2, 0], sizes = [1, 1, 8], strides = [1, 1, 1]} : vector<3x3x8xf32> to vector<1x1x8xf32>
    %105 = vector.shape_cast %104 : vector<1x1x8xf32> to vector<8xf32>
    %106 = vector.shape_cast %105 : vector<8xf32> to vector<1x1x8xf32>
    %107 = vector.broadcast %106 : vector<1x1x8xf32> to vector<1x16x8xf32>
    %108 = vector.broadcast %41 : vector<1x16x1xf32> to vector<1x16x8xf32>
    %109 = arith.mulf %107, %108 : vector<1x16x8xf32>
    %110 = vector.extract_strided_slice %93 {offsets = [1, 0, 0], sizes = [10, 16, 8], strides = [1, 1, 1]} : vector<12x16x8xf32> to vector<10x16x8xf32>
    %111 = vector.broadcast %109 : vector<1x16x8xf32> to vector<10x16x8xf32>
    %112 = arith.mulf %110, %111 : vector<10x16x8xf32>
    %113 = arith.addf %103, %112 : vector<10x16x8xf32>
    %114 = vector.extract_strided_slice %32 {offsets = [2, 2, 0], sizes = [1, 1, 8], strides = [1, 1, 1]} : vector<3x3x8xf32> to vector<1x1x8xf32>
    %115 = vector.shape_cast %114 : vector<1x1x8xf32> to vector<8xf32>
    %116 = vector.shape_cast %115 : vector<8xf32> to vector<1x1x8xf32>
    %117 = vector.broadcast %116 : vector<1x1x8xf32> to vector<1x16x8xf32>
    %118 = vector.broadcast %41 : vector<1x16x1xf32> to vector<1x16x8xf32>
    %119 = arith.mulf %117, %118 : vector<1x16x8xf32>
    %120 = vector.extract_strided_slice %93 {offsets = [2, 0, 0], sizes = [10, 16, 8], strides = [1, 1, 1]} : vector<12x16x8xf32> to vector<10x16x8xf32>
    %121 = vector.broadcast %119 : vector<1x16x8xf32> to vector<10x16x8xf32>
    %122 = arith.mulf %120, %121 : vector<10x16x8xf32>
    %123 = arith.addf %113, %122 : vector<10x16x8xf32>
    %c0_35 = arith.constant 0 : index
    %c0_36 = arith.constant 0 : index
    %124 = vector.load %arg8[%c0_35, %c0_36] : memref<1x8xf32, #tpu.memory_space<vmem>>, vector<1x8xf32>
    %125 = vector.shape_cast %124 : vector<1x8xf32> to vector<8xf32>
    %126 = vector.shape_cast %125 : vector<8xf32> to vector<1x1x8xf32>
    %127 = vector.broadcast %126 : vector<1x1x8xf32> to vector<10x16x8xf32>
    %128 = arith.addf %123, %127 : vector<10x16x8xf32>
    %129 = vector.shape_cast %128 : vector<10x16x8xf32> to vector<160x8xf32>
    %130 = arith.truncf %129 : vector<160x8xf32> to vector<160x8xbf16>
    %c0_37 = arith.constant 0 : index
    %c0_38 = arith.constant 0 : index
    %131 = vector.load %arg9[%c0_37, %c0_38] : memref<8x16xbf16, #tpu.memory_space<vmem>>, vector<8x16xbf16>
    %cst_39 = arith.constant dense<0.000000e+00> : vector<160x16xf32>
    %132 = tpu.matmul %130, %131, %cst_39 {dimension_numbers = #tpu.dot_dimension_numbers<[1], [0], [0], [1], [0, 0, 1, 1], [], []>} : vector<160x8xbf16>, vector<8x16xbf16>, vector<160x16xf32> -> vector<160x16xf32>
    %c0_40 = arith.constant 0 : index
    %c0_41 = arith.constant 0 : index
    %133 = vector.load %arg10[%c0_40, %c0_41] : memref<1x16xf32, #tpu.memory_space<vmem>>, vector<1x16xf32>
    %134 = vector.shape_cast %133 : vector<1x16xf32> to vector<16xf32>
    %135 = vector.shape_cast %134 : vector<16xf32> to vector<1x16xf32>
    %136 = vector.broadcast %135 : vector<1x16xf32> to vector<160x16xf32>
    %137 = arith.addf %132, %136 : vector<160x16xf32>
    %138 = vector.shape_cast %137 : vector<160x16xf32> to vector<10x16x16xf32>
    %c1_i32_42 = arith.constant 1 : i32
    %139 = arith.subi %0, %c1_i32_42 : i32
    %140 = tpu.iota {dimensions = array<i32: 0>} : vector<10x1x1xi32>
    %141 = vector.broadcast %139 : i32 to vector<10x1x1xi32>
    %142 = arith.addi %141, %140 : vector<10x1x1xi32>
    %c0_i32_43 = arith.constant 0 : i32
    %143 = vector.broadcast %c0_i32_43 : i32 to vector<10x1x1xi32>
    %144 = arith.cmpi sge, %142, %143 : vector<10x1x1xi32>
    %c16_i32_44 = arith.constant 16 : i32
    %145 = vector.broadcast %c16_i32_44 : i32 to vector<10x1x1xi32>
    %146 = arith.cmpi slt, %142, %145 : vector<10x1x1xi32>
    %147 = arith.andi %144, %146 : vector<10x1x1xi1>
    %cst_45 = arith.constant 0.000000e+00 : f32
    %148 = vector.shape_cast %147 : vector<10x1x1xi1> to vector<10x1x1xi1>
    %149 = vector.broadcast %148 : vector<10x1x1xi1> to vector<10x16x16xi1>
    %150 = vector.broadcast %cst_45 : f32 to vector<10x16x16xf32>
    %151 = arith.select %149, %138, %150 : vector<10x16x16xi1>, vector<10x16x16xf32>
    %cst_46 = arith.constant 0.000000e+00 : f32
    %152 = vector.broadcast %cst_46 : f32 to vector<10x16x16xf32>
    %153 = arith.maximumf %151, %152 : vector<10x16x16xf32>
    %c0_47 = arith.constant 0 : index
    %c0_48 = arith.constant 0 : index
    %c0_49 = arith.constant 0 : index
    %154 = vector.load %arg11[%c0_47, %c0_48, %c0_49] : memref<3x3x16xf32, #tpu.memory_space<vmem>>, vector<3x3x16xf32>
    %155 = tpu.iota {dimensions = array<i32: 1>} : vector<1x16x1xi32>
    %c1_i32_50 = arith.constant 1 : i32
    %156 = vector.broadcast %c1_i32_50 : i32 to vector<1x16x1xi32>
    %157 = arith.cmpi sge, %155, %156 : vector<1x16x1xi32>
    %158 = arith.extui %157 : vector<1x16x1xi1> to vector<1x16x1xi32>
    %159 = arith.sitofp %158 : vector<1x16x1xi32> to vector<1x16x1xf32>
    %c15_i32_51 = arith.constant 15 : i32
    %160 = vector.broadcast %c15_i32_51 : i32 to vector<1x16x1xi32>
    %161 = arith.cmpi slt, %155, %160 : vector<1x16x1xi32>
    %162 = arith.extui %161 : vector<1x16x1xi1> to vector<1x16x1xi32>
    %163 = arith.sitofp %162 : vector<1x16x1xi32> to vector<1x16x1xf32>
    %c1_i32_52 = arith.constant 1 : i32
    %164 = tpu.dynamic_rotate %153 by %c1_i32_52 dim 1 : vector<10x16x16xf32>, i32 -> vector<10x16x16xf32>
    %165 = vector.extract_strided_slice %154 {offsets = [0, 0, 0], sizes = [1, 1, 16], strides = [1, 1, 1]} : vector<3x3x16xf32> to vector<1x1x16xf32>
    %166 = vector.shape_cast %165 : vector<1x1x16xf32> to vector<16xf32>
    %167 = vector.shape_cast %166 : vector<16xf32> to vector<1x1x16xf32>
    %168 = vector.broadcast %167 : vector<1x1x16xf32> to vector<1x16x16xf32>
    %169 = vector.broadcast %159 : vector<1x16x1xf32> to vector<1x16x16xf32>
    %170 = arith.mulf %168, %169 : vector<1x16x16xf32>
    %171 = vector.extract_strided_slice %164 {offsets = [0, 0, 0], sizes = [8, 16, 16], strides = [1, 1, 1]} : vector<10x16x16xf32> to vector<8x16x16xf32>
    %172 = vector.broadcast %170 : vector<1x16x16xf32> to vector<8x16x16xf32>
    %173 = arith.mulf %171, %172 : vector<8x16x16xf32>
    %174 = vector.extract_strided_slice %154 {offsets = [1, 0, 0], sizes = [1, 1, 16], strides = [1, 1, 1]} : vector<3x3x16xf32> to vector<1x1x16xf32>
    %175 = vector.shape_cast %174 : vector<1x1x16xf32> to vector<16xf32>
    %176 = vector.shape_cast %175 : vector<16xf32> to vector<1x1x16xf32>
    %177 = vector.broadcast %176 : vector<1x1x16xf32> to vector<1x16x16xf32>
    %178 = vector.broadcast %159 : vector<1x16x1xf32> to vector<1x16x16xf32>
    %179 = arith.mulf %177, %178 : vector<1x16x16xf32>
    %180 = vector.extract_strided_slice %164 {offsets = [1, 0, 0], sizes = [8, 16, 16], strides = [1, 1, 1]} : vector<10x16x16xf32> to vector<8x16x16xf32>
    %181 = vector.broadcast %179 : vector<1x16x16xf32> to vector<8x16x16xf32>
    %182 = arith.mulf %180, %181 : vector<8x16x16xf32>
    %183 = arith.addf %173, %182 : vector<8x16x16xf32>
    %184 = vector.extract_strided_slice %154 {offsets = [2, 0, 0], sizes = [1, 1, 16], strides = [1, 1, 1]} : vector<3x3x16xf32> to vector<1x1x16xf32>
    %185 = vector.shape_cast %184 : vector<1x1x16xf32> to vector<16xf32>
    %186 = vector.shape_cast %185 : vector<16xf32> to vector<1x1x16xf32>
    %187 = vector.broadcast %186 : vector<1x1x16xf32> to vector<1x16x16xf32>
    %188 = vector.broadcast %159 : vector<1x16x1xf32> to vector<1x16x16xf32>
    %189 = arith.mulf %187, %188 : vector<1x16x16xf32>
    %190 = vector.extract_strided_slice %164 {offsets = [2, 0, 0], sizes = [8, 16, 16], strides = [1, 1, 1]} : vector<10x16x16xf32> to vector<8x16x16xf32>
    %191 = vector.broadcast %189 : vector<1x16x16xf32> to vector<8x16x16xf32>
    %192 = arith.mulf %190, %191 : vector<8x16x16xf32>
    %193 = arith.addf %183, %192 : vector<8x16x16xf32>
    %194 = vector.extract_strided_slice %154 {offsets = [0, 1, 0], sizes = [1, 1, 16], strides = [1, 1, 1]} : vector<3x3x16xf32> to vector<1x1x16xf32>
    %195 = vector.shape_cast %194 : vector<1x1x16xf32> to vector<16xf32>
    %196 = vector.extract_strided_slice %153 {offsets = [0, 0, 0], sizes = [8, 16, 16], strides = [1, 1, 1]} : vector<10x16x16xf32> to vector<8x16x16xf32>
    %197 = vector.shape_cast %195 : vector<16xf32> to vector<1x1x16xf32>
    %198 = vector.broadcast %197 : vector<1x1x16xf32> to vector<8x16x16xf32>
    %199 = arith.mulf %196, %198 : vector<8x16x16xf32>
    %200 = arith.addf %193, %199 : vector<8x16x16xf32>
    %201 = vector.extract_strided_slice %154 {offsets = [1, 1, 0], sizes = [1, 1, 16], strides = [1, 1, 1]} : vector<3x3x16xf32> to vector<1x1x16xf32>
    %202 = vector.shape_cast %201 : vector<1x1x16xf32> to vector<16xf32>
    %203 = vector.extract_strided_slice %153 {offsets = [1, 0, 0], sizes = [8, 16, 16], strides = [1, 1, 1]} : vector<10x16x16xf32> to vector<8x16x16xf32>
    %204 = vector.shape_cast %202 : vector<16xf32> to vector<1x1x16xf32>
    %205 = vector.broadcast %204 : vector<1x1x16xf32> to vector<8x16x16xf32>
    %206 = arith.mulf %203, %205 : vector<8x16x16xf32>
    %207 = arith.addf %200, %206 : vector<8x16x16xf32>
    %208 = vector.extract_strided_slice %154 {offsets = [2, 1, 0], sizes = [1, 1, 16], strides = [1, 1, 1]} : vector<3x3x16xf32> to vector<1x1x16xf32>
    %209 = vector.shape_cast %208 : vector<1x1x16xf32> to vector<16xf32>
    %210 = vector.extract_strided_slice %153 {offsets = [2, 0, 0], sizes = [8, 16, 16], strides = [1, 1, 1]} : vector<10x16x16xf32> to vector<8x16x16xf32>
    %211 = vector.shape_cast %209 : vector<16xf32> to vector<1x1x16xf32>
    %212 = vector.broadcast %211 : vector<1x1x16xf32> to vector<8x16x16xf32>
    %213 = arith.mulf %210, %212 : vector<8x16x16xf32>
    %214 = arith.addf %207, %213 : vector<8x16x16xf32>
    %c15_i32_53 = arith.constant 15 : i32
    %215 = tpu.dynamic_rotate %153 by %c15_i32_53 dim 1 : vector<10x16x16xf32>, i32 -> vector<10x16x16xf32>
    %216 = vector.extract_strided_slice %154 {offsets = [0, 2, 0], sizes = [1, 1, 16], strides = [1, 1, 1]} : vector<3x3x16xf32> to vector<1x1x16xf32>
    %217 = vector.shape_cast %216 : vector<1x1x16xf32> to vector<16xf32>
    %218 = vector.shape_cast %217 : vector<16xf32> to vector<1x1x16xf32>
    %219 = vector.broadcast %218 : vector<1x1x16xf32> to vector<1x16x16xf32>
    %220 = vector.broadcast %163 : vector<1x16x1xf32> to vector<1x16x16xf32>
    %221 = arith.mulf %219, %220 : vector<1x16x16xf32>
    %222 = vector.extract_strided_slice %215 {offsets = [0, 0, 0], sizes = [8, 16, 16], strides = [1, 1, 1]} : vector<10x16x16xf32> to vector<8x16x16xf32>
    %223 = vector.broadcast %221 : vector<1x16x16xf32> to vector<8x16x16xf32>
    %224 = arith.mulf %222, %223 : vector<8x16x16xf32>
    %225 = arith.addf %214, %224 : vector<8x16x16xf32>
    %226 = vector.extract_strided_slice %154 {offsets = [1, 2, 0], sizes = [1, 1, 16], strides = [1, 1, 1]} : vector<3x3x16xf32> to vector<1x1x16xf32>
    %227 = vector.shape_cast %226 : vector<1x1x16xf32> to vector<16xf32>
    %228 = vector.shape_cast %227 : vector<16xf32> to vector<1x1x16xf32>
    %229 = vector.broadcast %228 : vector<1x1x16xf32> to vector<1x16x16xf32>
    %230 = vector.broadcast %163 : vector<1x16x1xf32> to vector<1x16x16xf32>
    %231 = arith.mulf %229, %230 : vector<1x16x16xf32>
    %232 = vector.extract_strided_slice %215 {offsets = [1, 0, 0], sizes = [8, 16, 16], strides = [1, 1, 1]} : vector<10x16x16xf32> to vector<8x16x16xf32>
    %233 = vector.broadcast %231 : vector<1x16x16xf32> to vector<8x16x16xf32>
    %234 = arith.mulf %232, %233 : vector<8x16x16xf32>
    %235 = arith.addf %225, %234 : vector<8x16x16xf32>
    %236 = vector.extract_strided_slice %154 {offsets = [2, 2, 0], sizes = [1, 1, 16], strides = [1, 1, 1]} : vector<3x3x16xf32> to vector<1x1x16xf32>
    %237 = vector.shape_cast %236 : vector<1x1x16xf32> to vector<16xf32>
    %238 = vector.shape_cast %237 : vector<16xf32> to vector<1x1x16xf32>
    %239 = vector.broadcast %238 : vector<1x1x16xf32> to vector<1x16x16xf32>
    %240 = vector.broadcast %163 : vector<1x16x1xf32> to vector<1x16x16xf32>
    %241 = arith.mulf %239, %240 : vector<1x16x16xf32>
    %242 = vector.extract_strided_slice %215 {offsets = [2, 0, 0], sizes = [8, 16, 16], strides = [1, 1, 1]} : vector<10x16x16xf32> to vector<8x16x16xf32>
    %243 = vector.broadcast %241 : vector<1x16x16xf32> to vector<8x16x16xf32>
    %244 = arith.mulf %242, %243 : vector<8x16x16xf32>
    %245 = arith.addf %235, %244 : vector<8x16x16xf32>
    %c0_54 = arith.constant 0 : index
    %c0_55 = arith.constant 0 : index
    %246 = vector.load %arg12[%c0_54, %c0_55] : memref<1x16xf32, #tpu.memory_space<vmem>>, vector<1x16xf32>
    %247 = vector.shape_cast %246 : vector<1x16xf32> to vector<16xf32>
    %248 = vector.shape_cast %247 : vector<16xf32> to vector<1x1x16xf32>
    %249 = vector.broadcast %248 : vector<1x1x16xf32> to vector<8x16x16xf32>
    %250 = arith.addf %245, %249 : vector<8x16x16xf32>
    %251 = vector.shape_cast %250 : vector<8x16x16xf32> to vector<128x16xf32>
    %252 = arith.truncf %251 : vector<128x16xf32> to vector<128x16xbf16>
    %c0_56 = arith.constant 0 : index
    %c0_57 = arith.constant 0 : index
    %253 = vector.load %arg13[%c0_56, %c0_57] : memref<16x16xbf16, #tpu.memory_space<vmem>>, vector<16x16xbf16>
    %cst_58 = arith.constant dense<0.000000e+00> : vector<128x16xf32>
    %254 = tpu.matmul %252, %253, %cst_58 {dimension_numbers = #tpu.dot_dimension_numbers<[1], [0], [0], [1], [0, 0, 1, 1], [], []>} : vector<128x16xbf16>, vector<16x16xbf16>, vector<128x16xf32> -> vector<128x16xf32>
    %c0_59 = arith.constant 0 : index
    %c0_60 = arith.constant 0 : index
    %255 = vector.load %arg14[%c0_59, %c0_60] : memref<1x16xf32, #tpu.memory_space<vmem>>, vector<1x16xf32>
    %256 = vector.shape_cast %255 : vector<1x16xf32> to vector<16xf32>
    %257 = vector.shape_cast %256 : vector<16xf32> to vector<1x16xf32>
    %258 = vector.broadcast %257 : vector<1x16xf32> to vector<128x16xf32>
    %259 = arith.addf %254, %258 : vector<128x16xf32>
    %260 = vector.shape_cast %259 : vector<128x16xf32> to vector<8x16x16xf32>
    %c0_61 = arith.constant 0 : index
    %c0_62 = arith.constant 0 : index
    %c0_63 = arith.constant 0 : index
    %c0_64 = arith.constant 0 : index
    %261 = vector.load %arg15[%c0_61, %c0_62, %c0_63, %c0_64] : memref<1x8x16x16xf32, #tpu.memory_space<vmem>>, vector<1x8x16x16xf32>
    %262 = vector.shape_cast %261 : vector<1x8x16x16xf32> to vector<8x16x16xf32>
    %263 = vector.shape_cast %260 : vector<8x16x16xf32> to vector<1x8x16x16xf32>
    tpu.vector_store %arg15[%c0_61, %c0_62, %c0_63, %c0_64], %263 {strides = array<i32>} : memref<1x8x16x16xf32, #tpu.memory_space<vmem>>, vector<1x8x16x16xf32>,
    return
  }
  func.func @transform_0(%arg0: i32, %arg1: i32) -> (i32, i32, i32, i32) {
    %c0_i32 = arith.constant 0 : i32
    %c0_i32_0 = arith.constant 0 : i32
    %c0_i32_1 = arith.constant 0 : i32
    return %arg0, %arg1, %c0_i32, %c0_i32_0 : i32, i32, i32, i32
  }
  func.func @transform_1(%arg0: i32, %arg1: i32) -> (i32, i32, i32, i32) {
    %c8_i32 = arith.constant 8 : i32
    %0 = arith.muli %arg1, %c8_i32 : i32
    %c2_i32 = arith.constant 2 : i32
    %1 = arith.subi %0, %c2_i32 : i32
    %c0_i32 = arith.constant 0 : i32
    %2 = arith.maxsi %1, %c0_i32 : i32
    %c0_i32_0 = arith.constant 0 : i32
    %c0_i32_1 = arith.constant 0 : i32
    %c0_i32_2 = arith.constant 0 : i32
    return %arg0, %2, %c0_i32_0, %c0_i32_1 : i32, i32, i32, i32
  }
  func.func @transform_2(%arg0: i32, %arg1: i32) -> (i32, i32, i32, i32) {
    %c8_i32 = arith.constant 8 : i32
    %0 = arith.muli %arg1, %c8_i32 : i32
    %c1_i32 = arith.constant 1 : i32
    %1 = arith.subi %0, %c1_i32 : i32
    %c0_i32 = arith.constant 0 : i32
    %2 = arith.maxsi %1, %c0_i32 : i32
    %c0_i32_0 = arith.constant 0 : i32
    %c0_i32_1 = arith.constant 0 : i32
    %c0_i32_2 = arith.constant 0 : i32
    return %arg0, %2, %c0_i32_0, %c0_i32_1 : i32, i32, i32, i32
  }
  func.func @transform_3(%arg0: i32, %arg1: i32) -> (i32, i32, i32, i32) {
    %c1_i32 = arith.constant 1 : i32
    %0 = arith.addi %arg1, %c1_i32 : i32
    %c8_i32 = arith.constant 8 : i32
    %1 = arith.muli %0, %c8_i32 : i32
    %c0_i32 = arith.constant 0 : i32
    %2 = arith.addi %1, %c0_i32 : i32
    %c15_i32 = arith.constant 15 : i32
    %3 = arith.minsi %2, %c15_i32 : i32
    %c0_i32_0 = arith.constant 0 : i32
    %c0_i32_1 = arith.constant 0 : i32
    %c0_i32_2 = arith.constant 0 : i32
    return %arg0, %3, %c0_i32_0, %c0_i32_1 : i32, i32, i32, i32
  }
  func.func @transform_4(%arg0: i32, %arg1: i32) -> (i32, i32, i32, i32) {
    %c1_i32 = arith.constant 1 : i32
    %0 = arith.addi %arg1, %c1_i32 : i32
    %c8_i32 = arith.constant 8 : i32
    %1 = arith.muli %0, %c8_i32 : i32
    %c1_i32_0 = arith.constant 1 : i32
    %2 = arith.addi %1, %c1_i32_0 : i32
    %c15_i32 = arith.constant 15 : i32
    %3 = arith.minsi %2, %c15_i32 : i32
    %c0_i32 = arith.constant 0 : i32
    %c0_i32_1 = arith.constant 0 : i32
    %c0_i32_2 = arith.constant 0 : i32
    return %arg0, %3, %c0_i32, %c0_i32_1 : i32, i32, i32, i32
  }
  func.func @transform_5(%arg0: i32, %arg1: i32) -> (i32, i32, i32) {
    %c0_i32 = arith.constant 0 : i32
    %c0_i32_0 = arith.constant 0 : i32
    %c0_i32_1 = arith.constant 0 : i32
    %c0_i32_2 = arith.constant 0 : i32
    return %c0_i32, %c0_i32_0, %c0_i32_1 : i32, i32, i32
  }
  func.func @transform_6(%arg0: i32, %arg1: i32) -> (i32, i32) {
    %c0_i32 = arith.constant 0 : i32
    %c0_i32_0 = arith.constant 0 : i32
    %c0_i32_1 = arith.constant 0 : i32
    return %c0_i32, %c0_i32_0 : i32, i32
  }
  func.func @transform_7(%arg0: i32, %arg1: i32) -> (i32, i32) {
    %c0_i32 = arith.constant 0 : i32
    %c0_i32_0 = arith.constant 0 : i32
    %c0_i32_1 = arith.constant 0 : i32
    return %c0_i32, %c0_i32_0 : i32, i32
  }
  func.func @transform_8(%arg0: i32, %arg1: i32) -> (i32, i32) {
    %c0_i32 = arith.constant 0 : i32
    %c0_i32_0 = arith.constant 0 : i32
    %c0_i32_1 = arith.constant 0 : i32
    return %c0_i32, %c0_i32_0 : i32, i32
  }
  func.func @transform_9(%arg0: i32, %arg1: i32) -> (i32, i32, i32) {
    %c0_i32 = arith.constant 0 : i32
    %c0_i32_0 = arith.constant 0 : i32
    %c0_i32_1 = arith.constant 0 : i32
    %c0_i32_2 = arith.constant 0 : i32
    return %c0_i32, %c0_i32_0, %c0_i32_1 : i32, i32, i32
  }
  func.func @transform_10(%arg0: i32, %arg1: i32) -> (i32, i32) {
    %c0_i32 = arith.constant 0 : i32
    %c0_i32_0 = arith.constant 0 : i32
    %c0_i32_1 = arith.constant 0 : i32
    return %c0_i32, %c0_i32_0 : i32, i32
  }
  func.func @transform_11(%arg0: i32, %arg1: i32) -> (i32, i32) {
    %c0_i32 = arith.constant 0 : i32
    %c0_i32_0 = arith.constant 0 : i32
    %c0_i32_1 = arith.constant 0 : i32
    return %c0_i32, %c0_i32_0 : i32, i32
  }
  func.func @transform_12(%arg0: i32, %arg1: i32) -> (i32, i32) {
    %c0_i32 = arith.constant 0 : i32
    %c0_i32_0 = arith.constant 0 : i32
    %c0_i32_1 = arith.constant 0 : i32
    return %c0_i32, %c0_i32_0 : i32, i32
  }
  func.func @transform_13(%arg0: i32, %arg1: i32) -> (i32, i32, i32, i32) {
    %c0_i32 = arith.constant 0 : i32
    %c0_i32_0 = arith.constant 0 : i32
    %c0_i32_1 = arith.constant 0 : i32
    return %arg0, %arg1, %c0_i32, %c0_i32_0 : i32, i32, i32, i32
  }
}

</mosaic_0001>

<llo_original>
// kernel: tpu_custom_call.1
$region0: #{tpu_custom_call.1}
  #allocation0 [shape = 'u32[]', space=smem, size = 0x4, offset = 0x4, fixed_abs, tag = 'smem constant byte address 0x4 - core index']
  #allocation1 [shape = 'u32[144,128]{1,0:T(1,128)}', space=vmem, size = 0x12000, scoped, tag = 'internal scratch']
  %s0 = inlined_call_operand.vmem [shape: f32[2,16,16,8], index: 0, kind: input, shape index: {}]
  %s1 = inlined_call_operand.vmem [shape: f32[2,16,16,8], index: 1, kind: input, shape index: {}]
  %s2 = inlined_call_operand.vmem [shape: f32[2,16,16,8], index: 2, kind: input, shape index: {}]
  %s3 = inlined_call_operand.vmem [shape: f32[2,16,16,8], index: 3, kind: input, shape index: {}]
  %s4 = inlined_call_operand.vmem [shape: f32[2,16,16,8], index: 4, kind: input, shape index: {}]
  %s5 = inlined_call_operand.vmem [shape: f32[3,3,8], index: 5, kind: input, shape index: {}]
  %s6 = inlined_call_operand.vmem [shape: f32[1,8], index: 6, kind: input, shape index: {}]
  %s7 = inlined_call_operand.vmem [shape: bf16[8,16], index: 7, kind: input, shape index: {}]
  %s8 = inlined_call_operand.vmem [shape: f32[1,16], index: 8, kind: input, shape index: {}]
  %s9 = inlined_call_operand.vmem [shape: f32[3,3,16], index: 9, kind: input, shape index: {}]
  %s10 = inlined_call_operand.vmem [shape: f32[1,16], index: 10, kind: input, shape index: {}]
  %s11 = inlined_call_operand.vmem [shape: bf16[16,16], index: 11, kind: input, shape index: {}]
  %s12 = inlined_call_operand.vmem [shape: f32[1,16], index: 12, kind: input, shape index: {}]
  %s13 = inlined_call_operand.hbm [shape: f32[2,16,16,16], index: 13, kind: output, shape index: {}]
  %s14 = sld [smem:[#allocation0]]
  $region85: #{tpu_custom_call.1} parent=0
    _
  %s16 = ssub.s32 1, %s14
  %s17 = scalar_select 0, %s16, %s14
  $region1: #{tpu_custom_call.1} parent=0
    #allocation2 [shape = 'u8[131072]{0}', space=vmem, size = 0x20000, scoped, tag = 'output window, operand 0']
    #allocation3 [shape = 's32[2]{0}', space=sflag, size = 0x8, scoped, tag = 'scoped memory for tpu_custom_call.1']
    %18 = vsyncpa [#allocation3], 0
    %s19 = scalar_lea.sflag [#allocation3], 1
    %20 = vsyncpa %s19, 0
    loop: start=0, step=1, limit=6
    $region2: #{tpu_custom_call.1} parent=1 // loop_pre_header
      _
    $region3: #{tpu_custom_call.1} parent=1 // loop_header
      %s22 = sphi 0, %s26
      %p23 = scmp.ge.s32.totalorder %s22, 6
      %s29 = sphi 0, %s41
      %s30 = sphi 0, %s37
      %s31 = sphi 0, %s29
      %s32 = sphi 0, %s30
      %s33 = sphi 0, %s31
      %s34 = sphi 0, %s32
      %s46 = sphi 0, %s48
      %s49 = sphi 0, %s46
      %s50 = sphi 0, %s49
      %s66 = sphi 0, %s50
      %s82 = sphi 0, %s84
      %s85 = sphi 0, %s82
      %s86 = sphi 0, %s85
      %s102 = sphi 0, %s86
      %s118 = sphi 0, %s120
      %s121 = sphi 0, %s118
      %s122 = sphi 0, %s121
      %s138 = sphi 0, %s122
      %s154 = sphi 0, %s156
      %s157 = sphi 0, %s154
      %s158 = sphi 0, %s157
      %s174 = sphi 0, %s158
      %s192 = sphi 0, %s194
      %s195 = sphi 0, %s192
      %s196 = sphi 0, %s195
      %s212 = sphi 0, %s196
      %s216 = sphi 0, %s216
      %s218 = sphi 0, %s216
      %s219 = sphi 0, %s218
      %s233 = sphi 0, %s219
      %s237 = sphi 0, %s237
      %s239 = sphi 0, %s237
      %s240 = sphi 0, %s239
      %s254 = sphi 0, %s240
      %s258 = sphi 0, %s258
      %s260 = sphi 0, %s258
      %s261 = sphi 0, %s260
      %s275 = sphi 0, %s261
      %s279 = sphi 0, %s279
      %s281 = sphi 0, %s279
      %s282 = sphi 0, %s281
      %s296 = sphi 0, %s282
      %s300 = sphi 0, %s300
      %s302 = sphi 0, %s300
      %s303 = sphi 0, %s302
      %s317 = sphi 0, %s303
      %s321 = sphi 0, %s321
      %s323 = sphi 0, %s321
      %s324 = sphi 0, %s323
      %s338 = sphi 0, %s324
      %s342 = sphi 0, %s342
      %s344 = sphi 0, %s342
      %s345 = sphi 0, %s344
      %s359 = sphi 0, %s345
      %s363 = sphi 0, %s363
      %s365 = sphi 0, %s363
      %s366 = sphi 0, %s365
      %s380 = sphi 0, %s366
      %s388 = sphi 0, %s390
      %s391 = sphi 0, %s388
      %s392 = sphi 0, %s391
      %s408 = sphi 0, %s392
    $region4: #{tpu_custom_call.1} parent=1 // loop_header_branch
      %25 = sbr.rel (%p23) target = $region8
    $region5: #{tpu_custom_call.1} parent=1 // loop_body
      %s27 = ssub.s32 %s22, 1
      %s28 = ssub.s32 %s22, 2
      %s35 = sadd.s32 1, %s30
      %p36 = scmp.ge.s32.totalorder %s35, 2
      %s37 = scalar_select %p36, 0, %s35
      %s38 = sadd.s32 1, %s29
      %s39 = scalar_select %p36, %s38, %s29
      %p40 = scmp.ge.s32.totalorder %s39, 2
      %s41 = scalar_select %p40, 0, %s39
      %s42 = ssub.s32 %s29, %s41
      %s43 = ssub.s32 %s30, %s37
      %s44 = sor.u32 %s42, %s43
      %p45 = scmp.eq.s32.totalorder %s44, 0
      %s47 = sadd.s32 %s46, 1
      %s48 = scalar_select %p45, %s46, %s47
      %p51 = pneg %p45
      %p52 = scmp.eq.s32.totalorder %s22, 3
      %p53 = por %p51, %p52
      %p54 = scmp.ne.s32.totalorder %s46, %s49
      %p55 = scmp.eq.s32.totalorder %s22, 0
      %p56 = por %p54, %p55
      %p57 = scmp.ne.s32.totalorder %s46, %s49
      %p58 = scmp.eq.s32.totalorder %s27, 3
      %p59 = por %p57, %p58
      %p60 = scmp.ne.s32.totalorder %s49, %s50
      %p61 = scmp.eq.s32.totalorder %s27, 0
      %p62 = por %p60, %p61
      %p63 = scmp.ne.s32.totalorder %s49, %s50
      %p64 = scmp.eq.s32.totalorder %s28, 3
      %p65 = por %p63, %p64
      %p67 = scmp.ne.s32.totalorder %s50, %s66
      %p68 = scmp.eq.s32.totalorder %s28, 0
      %p69 = por %p67, %p68
      %s70 = smul.u32 %s30, 8
      %s71 = ssub.s32 %s70, 2
      %p72 = scmp.gt.s32.totalorder %s71, 0
      %s73 = scalar_select %p72, %s71, 0
      %s74 = smul.u32 %s37, 8
      %s75 = ssub.s32 %s74, 2
      %p76 = scmp.gt.s32.totalorder %s75, 0
      %s77 = scalar_select %p76, %s75, 0
      %s78 = ssub.s32 %s29, %s41
      %s79 = ssub.s32 %s73, %s77
      %s80 = sor.u32 %s78, %s79
      %p81 = scmp.eq.s32.totalorder %s80, 0
      %s83 = sadd.s32 %s82, 1
      %s84 = scalar_select %p81, %s82, %s83
      %p87 = pneg %p81
      %p88 = scmp.eq.s32.totalorder %s22, 3
      %p89 = por %p87, %p88
      %p90 = scmp.ne.s32.totalorder %s82, %s85
      %p91 = scmp.eq.s32.totalorder %s22, 0
      %p92 = por %p90, %p91
      %p93 = scmp.ne.s32.totalorder %s82, %s85
      %p94 = scmp.eq.s32.totalorder %s27, 3
      %p95 = por %p93, %p94
      %p96 = scmp.ne.s32.totalorder %s85, %s86
      %p97 = scmp.eq.s32.totalorder %s27, 0
      %p98 = por %p96, %p97
      %p99 = scmp.ne.s32.totalorder %s85, %s86
      %p100 = scmp.eq.s32.totalorder %s28, 3
      %p101 = por %p99, %p100
      %p103 = scmp.ne.s32.totalorder %s86, %s102
      %p104 = scmp.eq.s32.totalorder %s28, 0
      %p105 = por %p103, %p104
      %s106 = smul.u32 %s30, 8
      %s107 = ssub.s32 %s106, 1
      %p108 = scmp.gt.s32.totalorder %s107, 0
      %s109 = scalar_select %p108, %s107, 0
      %s110 = smul.u32 %s37, 8
      %s111 = ssub.s32 %s110, 1
      %p112 = scmp.gt.s32.totalorder %s111, 0
      %s113 = scalar_select %p112, %s111, 0
      %s114 = ssub.s32 %s29, %s41
      %s115 = ssub.s32 %s109, %s113
      %s116 = sor.u32 %s114, %s115
      %p117 = scmp.eq.s32.totalorder %s116, 0
      %s119 = sadd.s32 %s118, 1
      %s120 = scalar_select %p117, %s118, %s119
      %p123 = pneg %p117
      %p124 = scmp.eq.s32.totalorder %s22, 3
      %p125 = por %p123, %p124
      %p126 = scmp.ne.s32.totalorder %s118, %s121
      %p127 = scmp.eq.s32.totalorder %s22, 0
      %p128 = por %p126, %p127
      %p129 = scmp.ne.s32.totalorder %s118, %s121
      %p130 = scmp.eq.s32.totalorder %s27, 3
      %p131 = por %p129, %p130
      %p132 = scmp.ne.s32.totalorder %s121, %s122
      %p133 = scmp.eq.s32.totalorder %s27, 0
      %p134 = por %p132, %p133
      %p135 = scmp.ne.s32.totalorder %s121, %s122
      %p136 = scmp.eq.s32.totalorder %s28, 3
      %p137 = por %p135, %p136
      %p139 = scmp.ne.s32.totalorder %s122, %s138
      %p140 = scmp.eq.s32.totalorder %s28, 0
      %p141 = por %p139, %p140
      %s142 = sadd.s32 %s30, 1
      %s143 = smul.u32 %s142, 8
      %p144 = scmp.lt.s32.totalorder %s143, 15
      %s145 = scalar_select %p144, %s143, 15
      %s146 = sadd.s32 %s37, 1
      %s147 = smul.u32 %s146, 8
      %p148 = scmp.lt.s32.totalorder %s147, 15
      %s149 = scalar_select %p148, %s147, 15
      %s150 = ssub.s32 %s29, %s41
      %s151 = ssub.s32 %s145, %s149
      %s152 = sor.u32 %s150, %s151
      %p153 = scmp.eq.s32.totalorder %s152, 0
      %s155 = sadd.s32 %s154, 1
      %s156 = scalar_select %p153, %s154, %s155
      %p159 = pneg %p153
      %p160 = scmp.eq.s32.totalorder %s22, 3
      %p161 = por %p159, %p160
      %p162 = scmp.ne.s32.totalorder %s154, %s157
      %p163 = scmp.eq.s32.totalorder %s22, 0
      %p164 = por %p162, %p163
      %p165 = scmp.ne.s32.totalorder %s154, %s157
      %p166 = scmp.eq.s32.totalorder %s27, 3
      %p167 = por %p165, %p166
      %p168 = scmp.ne.s32.totalorder %s157, %s158
      %p169 = scmp.eq.s32.totalorder %s27, 0
      %p170 = por %p168, %p169
      %p171 = scmp.ne.s32.totalorder %s157, %s158
      %p172 = scmp.eq.s32.totalorder %s28, 3
      %p173 = por %p171, %p172
      %p175 = scmp.ne.s32.totalorder %s158, %s174
      %p176 = scmp.eq.s32.totalorder %s28, 0
      %p177 = por %p175, %p176
      %s178 = sadd.s32 %s30, 1
      %s179 = smul.u32 %s178, 8
      %s180 = sadd.s32 %s179, 1
      %p181 = scmp.lt.s32.totalorder %s180, 15
      %s182 = scalar_select %p181, %s180, 15
      %s183 = sadd.s32 %s37, 1
      %s184 = smul.u32 %s183, 8
      %s185 = sadd.s32 %s184, 1
      %p186 = scmp.lt.s32.totalorder %s185, 15
      %s187 = scalar_select %p186, %s185, 15
      %s188 = ssub.s32 %s29, %s41
      %s189 = ssub.s32 %s182, %s187
      %s190 = sor.u32 %s188, %s189
      %p191 = scmp.eq.s32.totalorder %s190, 0
      %s193 = sadd.s32 %s192, 1
      %s194 = scalar_select %p191, %s192, %s193
      %p197 = pneg %p191
      %p198 = scmp.eq.s32.totalorder %s22, 3
      %p199 = por %p197, %p198
      %p200 = scmp.ne.s32.totalorder %s192, %s195
      %p201 = scmp.eq.s32.totalorder %s22, 0
      %p202 = por %p200, %p201
      %p203 = scmp.ne.s32.totalorder %s192, %s195
      %p204 = scmp.eq.s32.totalorder %s27, 3
      %p205 = por %p203, %p204
      %p206 = scmp.ne.s32.totalorder %s195, %s196
      %p207 = scmp.eq.s32.totalorder %s27, 0
      %p208 = por %p206, %p207
      %p209 = scmp.ne.s32.totalorder %s195, %s196
      %p210 = scmp.eq.s32.totalorder %s28, 3
      %p211 = por %p209, %p210
      %p213 = scmp.ne.s32.totalorder %s196, %s212
      %p214 = scmp.eq.s32.totalorder %s28, 0
      %p215 = por %p213, %p214
      %s217 = sadd.s32 %s216, 1
      %p220 = scmp.eq.s32.totalorder %s22, 3
      %p221 = scmp.ne.s32.totalorder %s216, %s218
      %p222 = scmp.eq.s32.totalorder %s22, 0
      %p223 = por %p221, %p222
      %p224 = scmp.ne.s32.totalorder %s216, %s218
      %p225 = scmp.eq.s32.totalorder %s27, 3
      %p226 = por %p224, %p225
      %p227 = scmp.ne.s32.totalorder %s218, %s219
      %p228 = scmp.eq.s32.totalorder %s27, 0
      %p229 = por %p227, %p228
      %p230 = scmp.ne.s32.totalorder %s218, %s219
      %p231 = scmp.eq.s32.totalorder %s28, 3
      %p232 = por %p230, %p231
      %p234 = scmp.ne.s32.totalorder %s219, %s233
      %p235 = scmp.eq.s32.totalorder %s28, 0
      %p236 = por %p234, %p235
      %s238 = sadd.s32 %s237, 1
      %p241 = scmp.eq.s32.totalorder %s22, 3
      %p242 = scmp.ne.s32.totalorder %s237, %s239
      %p243 = scmp.eq.s32.totalorder %s22, 0
      %p244 = por %p242, %p243
      %p245 = scmp.ne.s32.totalorder %s237, %s239
      %p246 = scmp.eq.s32.totalorder %s27, 3
      %p247 = por %p245, %p246
      %p248 = scmp.ne.s32.totalorder %s239, %s240
      %p249 = scmp.eq.s32.totalorder %s27, 0
      %p250 = por %p248, %p249
      %p251 = scmp.ne.s32.totalorder %s239, %s240
      %p252 = scmp.eq.s32.totalorder %s28, 3
      %p253 = por %p251, %p252
      %p255 = scmp.ne.s32.totalorder %s240, %s254
      %p256 = scmp.eq.s32.totalorder %s28, 0
      %p257 = por %p255, %p256
      %s259 = sadd.s32 %s258, 1
      %p262 = scmp.eq.s32.totalorder %s22, 3
      %p263 = scmp.ne.s32.totalorder %s258, %s260
      %p264 = scmp.eq.s32.totalorder %s22, 0
      %p265 = por %p263, %p264
      %p266 = scmp.ne.s32.totalorder %s258, %s260
      %p267 = scmp.eq.s32.totalorder %s27, 3
      %p268 = por %p266, %p267
      %p269 = scmp.ne.s32.totalorder %s260, %s261
      %p270 = scmp.eq.s32.totalorder %s27, 0
      %p271 = por %p269, %p270
      %p272 = scmp.ne.s32.totalorder %s260, %s261
      %p273 = scmp.eq.s32.totalorder %s28, 3
      %p274 = por %p272, %p273
      %p276 = scmp.ne.s32.totalorder %s261, %s275
      %p277 = scmp.eq.s32.totalorder %s28, 0
      %p278 = por %p276, %p277
      %s280 = sadd.s32 %s279, 1
      %p283 = scmp.eq.s32.totalorder %s22, 3
      %p284 = scmp.ne.s32.totalorder %s279, %s281
      %p285 = scmp.eq.s32.totalorder %s22, 0
      %p286 = por %p284, %p285
      %p287 = scmp.ne.s32.totalorder %s279, %s281
      %p288 = scmp.eq.s32.totalorder %s27, 3
      %p289 = por %p287, %p288
      %p290 = scmp.ne.s32.totalorder %s281, %s282
      %p291 = scmp.eq.s32.totalorder %s27, 0
      %p292 = por %p290, %p291
      %p293 = scmp.ne.s32.totalorder %s281, %s282
      %p294 = scmp.eq.s32.totalorder %s28, 3
      %p295 = por %p293, %p294
      %p297 = scmp.ne.s32.totalorder %s282, %s296
      %p298 = scmp.eq.s32.totalorder %s28, 0
      %p299 = por %p297, %p298
      %s301 = sadd.s32 %s300, 1
      %p304 = scmp.eq.s32.totalorder %s22, 3
      %p305 = scmp.ne.s32.totalorder %s300, %s302
      %p306 = scmp.eq.s32.totalorder %s22, 0
      %p307 = por %p305, %p306
      %p308 = scmp.ne.s32.totalorder %s300, %s302
      %p309 = scmp.eq.s32.totalorder %s27, 3
      %p310 = por %p308, %p309
      %p311 = scmp.ne.s32.totalorder %s302, %s303
      %p312 = scmp.eq.s32.totalorder %s27, 0
      %p313 = por %p311, %p312
      %p314 = scmp.ne.s32.totalorder %s302, %s303
      %p315 = scmp.eq.s32.totalorder %s28, 3
      %p316 = por %p314, %p315
      %p318 = scmp.ne.s32.totalorder %s303, %s317
      %p319 = scmp.eq.s32.totalorder %s28, 0
      %p320 = por %p318, %p319
      %s322 = sadd.s32 %s321, 1
      %p325 = scmp.eq.s32.totalorder %s22, 3
      %p326 = scmp.ne.s32.totalorder %s321, %s323
      %p327 = scmp.eq.s32.totalorder %s22, 0
      %p328 = por %p326, %p327
      %p329 = scmp.ne.s32.totalorder %s321, %s323
      %p330 = scmp.eq.s32.totalorder %s27, 3
      %p331 = por %p329, %p330
      %p332 = scmp.ne.s32.totalorder %s323, %s324
      %p333 = scmp.eq.s32.totalorder %s27, 0
      %p334 = por %p332, %p333
      %p335 = scmp.ne.s32.totalorder %s323, %s324
      %p336 = scmp.eq.s32.totalorder %s28, 3
      %p337 = por %p335, %p336
      %p339 = scmp.ne.s32.totalorder %s324, %s338
      %p340 = scmp.eq.s32.totalorder %s28, 0
      %p341 = por %p339, %p340
      %s343 = sadd.s32 %s342, 1
      %p346 = scmp.eq.s32.totalorder %s22, 3
      %p347 = scmp.ne.s32.totalorder %s342, %s344
      %p348 = scmp.eq.s32.totalorder %s22, 0
      %p349 = por %p347, %p348
      %p350 = scmp.ne.s32.totalorder %s342, %s344
      %p351 = scmp.eq.s32.totalorder %s27, 3
      %p352 = por %p350, %p351
      %p353 = scmp.ne.s32.totalorder %s344, %s345
      %p354 = scmp.eq.s32.totalorder %s27, 0
      %p355 = por %p353, %p354
      %p356 = scmp.ne.s32.totalorder %s344, %s345
      %p357 = scmp.eq.s32.totalorder %s28, 3
      %p358 = por %p356, %p357
      %p360 = scmp.ne.s32.totalorder %s345, %s359
      %p361 = scmp.eq.s32.totalorder %s28, 0
      %p362 = por %p360, %p361
      %s364 = sadd.s32 %s363, 1
      %p367 = scmp.eq.s32.totalorder %s22, 3
      %p368 = scmp.ne.s32.totalorder %s363, %s365
      %p369 = scmp.eq.s32.totalorder %s22, 0
      %p370 = por %p368, %p369
      %p371 = scmp.ne.s32.totalorder %s363, %s365
      %p372 = scmp.eq.s32.totalorder %s27, 3
      %p373 = por %p371, %p372
      %p374 = scmp.ne.s32.totalorder %s365, %s366
      %p375 = scmp.eq.s32.totalorder %s27, 0
      %p376 = por %p374, %p375
      %p377 = scmp.ne.s32.totalorder %s365, %s366
      %p378 = scmp.eq.s32.totalorder %s28, 3
      %p379 = por %p377, %p378
      %p381 = scmp.ne.s32.totalorder %s366, %s380
      %p382 = scmp.eq.s32.totalorder %s28, 0
      %p383 = por %p381, %p382
      %s384 = ssub.s32 %s29, %s41
      %s385 = ssub.s32 %s30, %s37
      %s386 = sor.u32 %s384, %s385
      %p387 = scmp.eq.s32.totalorder %s386, 0
      %s389 = sadd.s32 %s388, 1
      %s390 = scalar_select %p387, %s388, %s389
      %p393 = pneg %p387
      %p394 = scmp.eq.s32.totalorder %s22, 3
      %p395 = por %p393, %p394
      %p396 = scmp.ne.s32.totalorder %s388, %s391
      %p397 = scmp.eq.s32.totalorder %s22, 0
      %p398 = por %p396, %p397
      %p399 = scmp.ne.s32.totalorder %s388, %s391
      %p400 = scmp.eq.s32.totalorder %s27, 3
      %p401 = por %p399, %p400
      %p402 = scmp.ne.s32.totalorder %s391, %s392
      %p403 = scmp.eq.s32.totalorder %s27, 0
      %p404 = por %p402, %p403
      %p405 = scmp.ne.s32.totalorder %s391, %s392
      %p406 = scmp.eq.s32.totalorder %s28, 3
      %p407 = por %p405, %p406
      %p409 = scmp.ne.s32.totalorder %s392, %s408
      %p410 = scmp.eq.s32.totalorder %s28, 0
      %p411 = por %p409, %p410
      %p412 = scmp.le.s32.totalorder 1, %s22
      %p413 = scmp.lt.s32.totalorder %s22, 5
      %p414 = pnand %p412, %p413
      %p415 = pneg %p414
      // Predicated region
      $region9: #{tpu_custom_call.1} parent=5 // pred_check
        _
      $region10: #{tpu_custom_call.1} parent=5 // pred_check_branch
        %417 = sbr.rel (%p414) target = $region12
      $region11: #{tpu_custom_call.1} parent=5 // pred_region
        %s418 = ssub.s32 %s22, 1
        // Predicated region
        $region13: #{tpu_custom_call.1} parent=11 // pred_check
          %p419 = pneg %p229
        $region14: #{tpu_custom_call.1} parent=11 // pred_check_branch
          %421 = sbr.rel (%p419) target = $region16
        $region15: #{tpu_custom_call.1} parent=11 // pred_region
          _
        $region16: #{tpu_custom_call.1} parent=11 // pred_fallthru
          _
        // Predicated region
        $region17: #{tpu_custom_call.1} parent=11 // pred_check
          %p422 = pneg %p250
        $region18: #{tpu_custom_call.1} parent=11 // pred_check_branch
          %424 = sbr.rel (%p422) target = $region20
        $region19: #{tpu_custom_call.1} parent=11 // pred_region
          _
        $region20: #{tpu_custom_call.1} parent=11 // pred_fallthru
          _
        // Predicated region
        $region21: #{tpu_custom_call.1} parent=11 // pred_check
          %p425 = pneg %p271
        $region22: #{tpu_custom_call.1} parent=11 // pred_check_branch
          %427 = sbr.rel (%p425) target = $region24
        $region23: #{tpu_custom_call.1} parent=11 // pred_region
          _
        $region24: #{tpu_custom_call.1} parent=11 // pred_fallthru
          _
        // Predicated region
        $region25: #{tpu_custom_call.1} parent=11 // pred_check
          %p428 = pneg %p292
        $region26: #{tpu_custom_call.1} parent=11 // pred_check_branch
          %430 = sbr.rel (%p428) target = $region28
        $region27: #{tpu_custom_call.1} parent=11 // pred_region
          _
        $region28: #{tpu_custom_call.1} parent=11 // pred_fallthru
          _
        // Predicated region
        $region29: #{tpu_custom_call.1} parent=11 // pred_check
          %p431 = pneg %p313
        $region30: #{tpu_custom_call.1} parent=11 // pred_check_branch
          %433 = sbr.rel (%p431) target = $region32
        $region31: #{tpu_custom_call.1} parent=11 // pred_region
          _
        $region32: #{tpu_custom_call.1} parent=11 // pred_fallthru
          _
        // Predicated region
        $region33: #{tpu_custom_call.1} parent=11 // pred_check
          %p434 = pneg %p334
        $region34: #{tpu_custom_call.1} parent=11 // pred_check_branch
          %436 = sbr.rel (%p434) target = $region36
        $region35: #{tpu_custom_call.1} parent=11 // pred_region
          _
        $region36: #{tpu_custom_call.1} parent=11 // pred_fallthru
          _
        // Predicated region
        $region37: #{tpu_custom_call.1} parent=11 // pred_check
          %p437 = pneg %p355
        $region38: #{tpu_custom_call.1} parent=11 // pred_check_branch
          %439 = sbr.rel (%p437) target = $region40
        $region39: #{tpu_custom_call.1} parent=11 // pred_region
          _
        $region40: #{tpu_custom_call.1} parent=11 // pred_fallthru
          _
        // Predicated region
        $region41: #{tpu_custom_call.1} parent=11 // pred_check
          %p440 = pneg %p376
        $region42: #{tpu_custom_call.1} parent=11 // pred_check_branch
          %442 = sbr.rel (%p440) target = $region44
        $region43: #{tpu_custom_call.1} parent=11 // pred_region
          _
        $region44: #{tpu_custom_call.1} parent=11 // pred_fallthru
          _
      $region12: #{tpu_custom_call.1} parent=5 // pred_fallthru
        _
      %p443 = scmp.lt.s32.totalorder %s22, 4
      // Predicated region
      $region45: #{tpu_custom_call.1} parent=5 // pred_check
        %p444 = pneg %p443
      $region46: #{tpu_custom_call.1} parent=5 // pred_check_branch
        %446 = sbr.rel (%p444) target = $region48
      $region47: #{tpu_custom_call.1} parent=5 // pred_region
        // Predicated region
        $region49: #{tpu_custom_call.1} parent=47 // pred_check
          %p447 = pneg %p56
        $region50: #{tpu_custom_call.1} parent=47 // pred_check_branch
          %449 = sbr.rel (%p447) target = $region52
        $region51: #{tpu_custom_call.1} parent=47 // pred_region
          %s450 = smul.u32 8, %s30
          %p451 = scmp.lt.s32.totalorder %s29, 1
          %s452 = scalar_select %p451, %s29, 1
          %p453 = scmp.lt.s32.totalorder %s450, 15
          %s454 = scalar_select %p453, %s450, 15
          %s455 = smul.addr %s454, 2
          %s456 = smul.addr %s452, 32
          %s457 = sadd.s32 %s455, %s456
          %s458 = smul.addr %s457, 8
          %s459 = scalar_lea.vmem %s0, %s458
          %s460 = smul.u32 8, %s30
        $region52: #{tpu_custom_call.1} parent=47 // pred_fallthru
          _
        // Predicated region
        $region53: #{tpu_custom_call.1} parent=47 // pred_check
          %p461 = pneg %p92
        $region54: #{tpu_custom_call.1} parent=47 // pred_check_branch
          %463 = sbr.rel (%p461) target = $region56
        $region55: #{tpu_custom_call.1} parent=47 // pred_region
          %s464 = smul.u32 %s30, 8
          %s465 = ssub.s32 %s464, 2
          %p466 = scmp.gt.s32.totalorder %s465, 0
          %s467 = scalar_select %p466, %s465, 0
          %p468 = scmp.lt.s32.totalorder %s29, 1
          %s469 = scalar_select %p468, %s29, 1
          %p470 = scmp.lt.s32.totalorder %s467, 15
          %s471 = scalar_select %p470, %s467, 15
          %s472 = smul.addr %s471, 2
          %s473 = smul.addr %s469, 32
          %s474 = sadd.s32 %s472, %s473
          %s475 = smul.addr %s474, 8
          %s476 = scalar_lea.vmem %s1, %s475
          %s477 = smul.u32 %s30, 8
          %s478 = ssub.s32 %s477, 2
          %p479 = scmp.gt.s32.totalorder %s478, 0
          %s480 = scalar_select %p479, %s478, 0
        $region56: #{tpu_custom_call.1} parent=47 // pred_fallthru
          _
        // Predicated region
        $region57: #{tpu_custom_call.1} parent=47 // pred_check
          %p481 = pneg %p128
        $region58: #{tpu_custom_call.1} parent=47 // pred_check_branch
          %483 = sbr.rel (%p481) target = $region60
        $region59: #{tpu_custom_call.1} parent=47 // pred_region
          %s484 = smul.u32 %s30, 8
          %s485 = ssub.s32 %s484, 1
          %p486 = scmp.gt.s32.totalorder %s485, 0
          %s487 = scalar_select %p486, %s485, 0
          %p488 = scmp.lt.s32.totalorder %s29, 1
          %s489 = scalar_select %p488, %s29, 1
          %p490 = scmp.lt.s32.totalorder %s487, 15
          %s491 = scalar_select %p490, %s487, 15
          %s492 = smul.addr %s491, 2
          %s493 = smul.addr %s489, 32
          %s494 = sadd.s32 %s492, %s493
          %s495 = smul.addr %s494, 8
          %s496 = scalar_lea.vmem %s2, %s495
          %s497 = smul.u32 %s30, 8
          %s498 = ssub.s32 %s497, 1
          %p499 = scmp.gt.s32.totalorder %s498, 0
          %s500 = scalar_select %p499, %s498, 0
        $region60: #{tpu_custom_call.1} parent=47 // pred_fallthru
          _
        // Predicated region
        $region61: #{tpu_custom_call.1} parent=47 // pred_check
          %p501 = pneg %p164
        $region62: #{tpu_custom_call.1} parent=47 // pred_check_branch
          %503 = sbr.rel (%p501) target = $region64
        $region63: #{tpu_custom_call.1} parent=47 // pred_region
          %s504 = sadd.s32 %s30, 1
          %s505 = smul.u32 %s504, 8
          %p506 = scmp.lt.s32.totalorder %s505, 15
          %s507 = scalar_select %p506, %s505, 15
          %p508 = scmp.lt.s32.totalorder %s29, 1
          %s509 = scalar_select %p508, %s29, 1
          %p510 = scmp.lt.s32.totalorder %s507, 15
          %s511 = scalar_select %p510, %s507, 15
          %s512 = smul.addr %s511, 2
          %s513 = smul.addr %s509, 32
          %s514 = sadd.s32 %s512, %s513
          %s515 = smul.addr %s514, 8
          %s516 = scalar_lea.vmem %s3, %s515
          %s517 = sadd.s32 %s30, 1
          %s518 = smul.u32 %s517, 8
          %p519 = scmp.lt.s32.totalorder %s518, 15
          %s520 = scalar_select %p519, %s518, 15
        $region64: #{tpu_custom_call.1} parent=47 // pred_fallthru
          _
        // Predicated region
        $region65: #{tpu_custom_call.1} parent=47 // pred_check
          %p521 = pneg %p202
        $region66: #{tpu_custom_call.1} parent=47 // pred_check_branch
          %523 = sbr.rel (%p521) target = $region68
        $region67: #{tpu_custom_call.1} parent=47 // pred_region
          %s524 = sadd.s32 %s30, 1
          %s525 = smul.u32 %s524, 8
          %s526 = sadd.s32 %s525, 1
          %p527 = scmp.lt.s32.totalorder %s526, 15
          %s528 = scalar_select %p527, %s526, 15
          %p529 = scmp.lt.s32.totalorder %s29, 1
          %s530 = scalar_select %p529, %s29, 1
          %p531 = scmp.lt.s32.totalorder %s528, 15
          %s532 = scalar_select %p531, %s528, 15
          %s533 = smul.addr %s532, 2
          %s534 = smul.addr %s530, 32
          %s535 = sadd.s32 %s533, %s534
          %s536 = smul.addr %s535, 8
          %s537 = scalar_lea.vmem %s4, %s536
          %s538 = sadd.s32 %s30, 1
          %s539 = smul.u32 %s538, 8
          %s540 = sadd.s32 %s539, 1
          %p541 = scmp.lt.s32.totalorder %s540, 15
          %s542 = scalar_select %p541, %s540, 15
        $region68: #{tpu_custom_call.1} parent=47 // pred_fallthru
          _
      $region48: #{tpu_custom_call.1} parent=5 // pred_fallthru
        _
      %p543 = scmp.le.s32.totalorder 1, %s22
      %p544 = scmp.lt.s32.totalorder %s22, 5
      %p545 = pnand %p543, %p544
      %p546 = pneg %p545
      // Predicated region
      $region69: #{tpu_custom_call.1} parent=5 // pred_check
        _
      $region70: #{tpu_custom_call.1} parent=5 // pred_check_branch
        %548 = sbr.rel (%p545) target = $region72
      $region71: #{tpu_custom_call.1} parent=5 // pred_region
        %s549 = ssub.s32 %s22, 1
        %s550 = smul.u32 8, %s32
        %p551 = scmp.lt.s32.totalorder %s31, 1
        %s552 = scalar_select %p551, %s31, 1
        %p553 = scmp.lt.s32.totalorder %s550, 15
        %s554 = scalar_select %p553, %s550, 15
        %s555 = smul.addr %s554, 2
        %s556 = smul.addr %s552, 32
        %s557 = sadd.s32 %s555, %s556
        %s558 = smul.addr %s557, 8
        %s559 = scalar_lea.vmem %s0, %s558
        %p560 = pneg %p62
        %p561 = pneg %p59
        %s562 = smul.u32 %s32, 8
        %s563 = ssub.s32 %s562, 2
        %p564 = scmp.gt.s32.totalorder %s563, 0
        %s565 = scalar_select %p564, %s563, 0
        %p566 = scmp.lt.s32.totalorder %s31, 1
        %s567 = scalar_select %p566, %s31, 1
        %p568 = scmp.lt.s32.totalorder %s565, 15
        %s569 = scalar_select %p568, %s565, 15
        %s570 = smul.addr %s569, 2
        %s571 = smul.addr %s567, 32
        %s572 = sadd.s32 %s570, %s571
        %s573 = smul.addr %s572, 8
        %s574 = scalar_lea.vmem %s1, %s573
        %p575 = pneg %p98
        %p576 = pneg %p95
        %s577 = smul.u32 %s32, 8
        %s578 = ssub.s32 %s577, 1
        %p579 = scmp.gt.s32.totalorder %s578, 0
        %s580 = scalar_select %p579, %s578, 0
        %p581 = scmp.lt.s32.totalorder %s31, 1
        %s582 = scalar_select %p581, %s31, 1
        %p583 = scmp.lt.s32.totalorder %s580, 15
        %s584 = scalar_select %p583, %s580, 15
        %s585 = smul.addr %s584, 2
        %s586 = smul.addr %s582, 32
        %s587 = sadd.s32 %s585, %s586
        %s588 = smul.addr %s587, 8
        %s589 = scalar_lea.vmem %s2, %s588
        %p590 = pneg %p134
        %p591 = pneg %p131
        %s592 = sadd.s32 %s32, 1
        %s593 = smul.u32 %s592, 8
        %p594 = scmp.lt.s32.totalorder %s593, 15
        %s595 = scalar_select %p594, %s593, 15
        %p596 = scmp.lt.s32.totalorder %s31, 1
        %s597 = scalar_select %p596, %s31, 1
        %p598 = scmp.lt.s32.totalorder %s595, 15
        %s599 = scalar_select %p598, %s595, 15
        %s600 = smul.addr %s599, 2
        %s601 = smul.addr %s597, 32
        %s602 = sadd.s32 %s600, %s601
        %s603 = smul.addr %s602, 8
        %s604 = scalar_lea.vmem %s3, %s603
        %p605 = pneg %p170
        %p606 = pneg %p167
        %s607 = sadd.s32 %s32, 1
        %s608 = smul.u32 %s607, 8
        %s609 = sadd.s32 %s608, 1
        %p610 = scmp.lt.s32.totalorder %s609, 15
        %s611 = scalar_select %p610, %s609, 15
        %p612 = scmp.lt.s32.totalorder %s31, 1
        %s613 = scalar_select %p612, %s31, 1
        %p614 = scmp.lt.s32.totalorder %s611, 15
        %s615 = scalar_select %p614, %s611, 15
        %s616 = smul.addr %s615, 2
        %s617 = smul.addr %s613, 32
        %s618 = sadd.s32 %s616, %s617
        %s619 = smul.addr %s618, 8
        %s620 = scalar_lea.vmem %s4, %s619
        %p621 = pneg %p208
        %p622 = pneg %p205
        %p623 = pneg %p229
        %p624 = pneg %p226
        %p625 = pneg %p250
        %p626 = pneg %p247
        %p627 = pneg %p271
        %p628 = pneg %p268
        %p629 = pneg %p292
        %p630 = pneg %p289
        %p631 = pneg %p313
        %p632 = pneg %p310
        %p633 = pneg %p334
        %p634 = pneg %p331
        %p635 = pneg %p355
        %p636 = pneg %p352
        %p637 = pneg %p376
        %p638 = pneg %p373
        %p639 = pneg %p404
        %p640 = pneg %p401
        %s641 = sand.u32 %s391, 1
        %s642 = scalar_lea.sflag [#allocation3], %s641
        %s643 = sand.u32 %s391, 1
        %s644 = smul.addr %s643, 128
        %s645 = scalar_lea.vmem [#allocation2], %s644
        %s646 = smul.u32 8, %s32
        %p647 = scmp.lt.s32.totalorder %s31, 1
        %s648 = scalar_select %p647, %s31, 1
        %p649 = scmp.lt.s32.totalorder %s646, 15
        %s650 = scalar_select %p649, %s646, 15
        %s651 = smul.addr %s650, 2
        %s652 = smul.addr %s648, 32
        %s653 = sadd.s32 %s651, %s652
        %s654 = smul.addr %s653, 8
        %s655 = scalar_lea.vmem %s0, %s654
        %s656 = smul.u32 8, %s32
        %s657 = smul.u32 %s32, 8
        %s658 = ssub.s32 %s657, 2
        %p659 = scmp.gt.s32.totalorder %s658, 0
        %s660 = scalar_select %p659, %s658, 0
        %p661 = scmp.lt.s32.totalorder %s31, 1
        %s662 = scalar_select %p661, %s31, 1
        %p663 = scmp.lt.s32.totalorder %s660, 15
        %s664 = scalar_select %p663, %s660, 15
        %s665 = smul.addr %s664, 2
        %s666 = smul.addr %s662, 32
        %s667 = sadd.s32 %s665, %s666
        %s668 = smul.addr %s667, 8
        %s669 = scalar_lea.vmem %s1, %s668
        %s670 = smul.u32 %s32, 8
        %s671 = ssub.s32 %s670, 2
        %p672 = scmp.gt.s32.totalorder %s671, 0
        %s673 = scalar_select %p672, %s671, 0
        %s674 = smul.u32 %s32, 8
        %s675 = ssub.s32 %s674, 1
        %p676 = scmp.gt.s32.totalorder %s675, 0
        %s677 = scalar_select %p676, %s675, 0
        %p678 = scmp.lt.s32.totalorder %s31, 1
        %s679 = scalar_select %p678, %s31, 1
        %p680 = scmp.lt.s32.totalorder %s677, 15
        %s681 = scalar_select %p680, %s677, 15
        %s682 = smul.addr %s681, 2
        %s683 = smul.addr %s679, 32
        %s684 = sadd.s32 %s682, %s683
        %s685 = smul.addr %s684, 8
        %s686 = scalar_lea.vmem %s2, %s685
        %s687 = smul.u32 %s32, 8
        %s688 = ssub.s32 %s687, 1
        %p689 = scmp.gt.s32.totalorder %s688, 0
        %s690 = scalar_select %p689, %s688, 0
        %s691 = sadd.s32 %s32, 1
        %s692 = smul.u32 %s691, 8
        %p693 = scmp.lt.s32.totalorder %s692, 15
        %s694 = scalar_select %p693, %s692, 15
        %p695 = scmp.lt.s32.totalorder %s31, 1
        %s696 = scalar_select %p695, %s31, 1
        %p697 = scmp.lt.s32.totalorder %s694, 15
        %s698 = scalar_select %p697, %s694, 15
        %s699 = smul.addr %s698, 2
        %s700 = smul.addr %s696, 32
        %s701 = sadd.s32 %s699, %s700
        %s702 = smul.addr %s701, 8
        %s703 = scalar_lea.vmem %s3, %s702
        %s704 = sadd.s32 %s32, 1
        %s705 = smul.u32 %s704, 8
        %p706 = scmp.lt.s32.totalorder %s705, 15
        %s707 = scalar_select %p706, %s705, 15
        %s708 = sadd.s32 %s32, 1
        %s709 = smul.u32 %s708, 8
        %s710 = sadd.s32 %s709, 1
        %p711 = scmp.lt.s32.totalorder %s710, 15
        %s712 = scalar_select %p711, %s710, 15
        %p713 = scmp.lt.s32.totalorder %s31, 1
        %s714 = scalar_select %p713, %s31, 1
        %p715 = scmp.lt.s32.totalorder %s712, 15
        %s716 = scalar_select %p715, %s712, 15
        %s717 = smul.addr %s716, 2
        %s718 = smul.addr %s714, 32
        %s719 = sadd.s32 %s717, %s718
        %s720 = smul.addr %s719, 8
        %s721 = scalar_lea.vmem %s4, %s720
        %s722 = sadd.s32 %s32, 1
        %s723 = smul.u32 %s722, 8
        %s724 = sadd.s32 %s723, 1
        %p725 = scmp.lt.s32.totalorder %s724, 15
        %s726 = scalar_select %p725, %s724, 15
        %s727 = smul.u32 8, %s32
        %s729 = smul.u32 %s32, 8
        %v730 = vld [vmem:[%s669] sm:$0xff]
        %v731 = vld [vmem:[%s669 + $0x8] sm:$0xff]
        %s732 = ssub.s32 %s729, 2
        %p733 = scmp.ge.s32.totalorder %s732, 0
        %s734 = scalar_select %p733, 1, 0
        %v735 = vstv %s734
        %vm736 = vcmp.eq.s32.totalorder %v735, 1
        %v737 = vsel %vm736, %v730, 0.0
        %v738 = vsel %vm736, %v731, 0.0
        %v739 = vld [vmem:[%s686] sm:$0xff]
        %v740 = vld [vmem:[%s686 + $0x8] sm:$0xff]
        %s741 = ssub.s32 %s729, 1
        %p742 = scmp.ge.s32.totalorder %s741, 0
        %s743 = scalar_select %p742, 1, 0
        %v744 = vstv %s743
        %vm745 = vcmp.eq.s32.totalorder %v744, 1
        %v746 = vsel %vm745, %v739, 0.0
        %v747 = vsel %vm745, %v740, 0.0
        %v748 = vld [vmem:[%s655] sm:$0xff]
        %v749 = vld [vmem:[%s655 + $0x8] sm:$0xff]
        %v750 = vld [vmem:[%s655 + $0x10] sm:$0xff]
        %v751 = vld [vmem:[%s655 + $0x18] sm:$0xff]
        %v752 = vld [vmem:[%s655 + $0x20] sm:$0xff]
        %v753 = vld [vmem:[%s655 + $0x28] sm:$0xff]
        %v754 = vld [vmem:[%s655 + $0x30] sm:$0xff]
        %v755 = vld [vmem:[%s655 + $0x38] sm:$0xff]
        %v756 = vld [vmem:[%s655 + $0x40] sm:$0xff]
        %v757 = vld [vmem:[%s655 + $0x48] sm:$0xff]
        %v758 = vld [vmem:[%s655 + $0x50] sm:$0xff]
        %v759 = vld [vmem:[%s655 + $0x58] sm:$0xff]
        %v760 = vld [vmem:[%s655 + $0x60] sm:$0xff]
        %v761 = vld [vmem:[%s655 + $0x68] sm:$0xff]
        %v762 = vld [vmem:[%s655 + $0x70] sm:$0xff]
        %v763 = vld [vmem:[%s655 + $0x78] sm:$0xff]
        %v764 = vld [vmem:[%s703] sm:$0xff]
        %v765 = vld [vmem:[%s703 + $0x8] sm:$0xff]
        %s766 = sadd.s32 %s729, 8
        %p767 = scmp.lt.s32.totalorder %s766, 16
        %s768 = scalar_select %p767, 1, 0
        %v769 = vstv %s768
        %vm770 = vcmp.eq.s32.totalorder %v769, 1
        %v771 = vsel %vm770, %v764, 0.0
        %v772 = vsel %vm770, %v765, 0.0
        %v773 = vld [vmem:[%s721] sm:$0xff]
        %v774 = vld [vmem:[%s721 + $0x8] sm:$0xff]
        %s775 = sadd.s32 %s729, 9
        %p776 = scmp.lt.s32.totalorder %s775, 16
        %s777 = scalar_select %p776, 1, 0
        %v778 = vstv %s777
        %vm779 = vcmp.eq.s32.totalorder %v778, 1
        %v780 = vsel %vm779, %v773, 0.0
        %v781 = vsel %vm779, %v774, 0.0
        %v782 = vmax.f32 %v737, 0.0
        %v783 = vmax.f32 %v738, 0.0
        %v784 = vmax.f32 %v746, 0.0
        %v785 = vmax.f32 %v747, 0.0
        %v786 = vmax.f32 %v748, 0.0
        %v787 = vmax.f32 %v749, 0.0
        %v788 = vmax.f32 %v750, 0.0
        %v789 = vmax.f32 %v751, 0.0
        %v790 = vmax.f32 %v752, 0.0
        %v791 = vmax.f32 %v753, 0.0
        %v792 = vmax.f32 %v754, 0.0
        %v793 = vmax.f32 %v755, 0.0
        %v794 = vmax.f32 %v756, 0.0
        %v795 = vmax.f32 %v757, 0.0
        %v796 = vmax.f32 %v758, 0.0
        %v797 = vmax.f32 %v759, 0.0
        %v798 = vmax.f32 %v760, 0.0
        %v799 = vmax.f32 %v761, 0.0
        %v800 = vmax.f32 %v762, 0.0
        %v801 = vmax.f32 %v763, 0.0
        %v802 = vmax.f32 %v771, 0.0
        %v803 = vmax.f32 %v772, 0.0
        %v804 = vmax.f32 %v780, 0.0
        %v805 = vmax.f32 %v781, 0.0
        %v806 = vld [vmem:[%s5] sm:$0x7]
        %v807 = vld [vmem:[%s5 + $0x4] sm:$0x7]
        %v808 = vld [vmem:[%s5 + $0x8] sm:$0x7]
        %v809 = vlaneseq
        %v810 = vshrl.u32 %v809, 7
        %v811 = vadd.s32 %v810, 8
        %vm812 = vcmp.ge.s32.totalorder %v810, 1
        %vm813 = vcmp.ge.s32.totalorder %v811, 1
        %v814 = vsel %vm812, 1, 0
        %v815 = vsel %vm813, 1, 0
        %v816 = vcvt.s32.f32 %v814
        %v817 = vcvt.s32.f32 %v815
        %vm818 = vcmp.lt.s32.totalorder %v810, 15
        %vm819 = vcmp.lt.s32.totalorder %v811, 15
        %v820 = vsel %vm818, 1, 0
        %v821 = vsel %vm819, 1, 0
        %v822 = vcvt.s32.f32 %v820
        %v823 = vcvt.s32.f32 %v821
        %v824 = vrot.slane %v782, 7
        %v825 = vrot.slane %v784, 7
        %v826 = vrot.slane %v786, 7
        %v827 = vrot.slane %v788, 7
        %v828 = vrot.slane %v790, 7
        %v829 = vrot.slane %v792, 7
        %v830 = vrot.slane %v794, 7
        %v831 = vrot.slane %v796, 7
        %v832 = vrot.slane %v798, 7
        %v833 = vrot.slane %v800, 7
        %v834 = vrot.slane %v802, 7
        %v835 = vrot.slane %v804, 7
        %v836 = vrot.slane %v783, 7
        %v837 = vrot.slane %v785, 7
        %v838 = vrot.slane %v787, 7
        %v839 = vrot.slane %v789, 7
        %v840 = vrot.slane %v791, 7
        %v841 = vrot.slane %v793, 7
        %v842 = vrot.slane %v795, 7
        %v843 = vrot.slane %v797, 7
        %v844 = vrot.slane %v799, 7
        %v845 = vrot.slane %v801, 7
        %v846 = vrot.slane %v803, 7
        %v847 = vrot.slane %v805, 7
        %vm848 = vcmp.lt.s32.totalorder %v810, 1
        %v849 = vsel %vm848, %v824, %v836
        %v850 = vsel %vm848, %v825, %v837
        %v851 = vsel %vm848, %v826, %v838
        %v852 = vsel %vm848, %v827, %v839
        %v853 = vsel %vm848, %v828, %v840
        %v854 = vsel %vm848, %v829, %v841
        %v855 = vsel %vm848, %v830, %v842
        %v856 = vsel %vm848, %v831, %v843
        %v857 = vsel %vm848, %v832, %v844
        %v858 = vsel %vm848, %v833, %v845
        %v859 = vsel %vm848, %v834, %v846
        %v860 = vsel %vm848, %v835, %v847
        %v861 = vsel %vm848, %v836, %v824
        %v862 = vsel %vm848, %v837, %v825
        %v863 = vsel %vm848, %v838, %v826
        %v864 = vsel %vm848, %v839, %v827
        %v865 = vsel %vm848, %v840, %v828
        %v866 = vsel %vm848, %v841, %v829
        %v867 = vsel %vm848, %v842, %v830
        %v868 = vsel %vm848, %v843, %v831
        %v869 = vsel %vm848, %v844, %v832
        %v870 = vsel %vm848, %v845, %v833
        %v871 = vsel %vm848, %v846, %v834
        %v872 = vsel %vm848, %v847, %v835
        %v873 = vlaneseq
        %v874 = vshrl.u32 %v873, 7
        %v875 = vsub.s32 0, %v874
        %v876 = vrot.slane %v806, %v875
        %v877 = vmul.f32 %v876, %v816
        %v878 = vmul.f32 %v876, %v817
        %v879 = vmul.f32 %v861, %v877
        %v880 = vmul.f32 %v849, %v878
        %v881 = vmul.f32 %v862, %v877
        %v882 = vmul.f32 %v850, %v878
        %v883 = vmul.f32 %v863, %v877
        %v884 = vmul.f32 %v851, %v878
        %v885 = vmul.f32 %v864, %v877
        %v886 = vmul.f32 %v852, %v878
        %v887 = vmul.f32 %v865, %v877
        %v888 = vmul.f32 %v853, %v878
        %v889 = vmul.f32 %v866, %v877
        %v890 = vmul.f32 %v854, %v878
        %v891 = vmul.f32 %v867, %v877
        %v892 = vmul.f32 %v855, %v878
        %v893 = vmul.f32 %v868, %v877
        %v894 = vmul.f32 %v856, %v878
        %v895 = vmul.f32 %v869, %v877
        %v896 = vmul.f32 %v857, %v878
        %v897 = vmul.f32 %v870, %v877
        %v898 = vmul.f32 %v858, %v878
        %v899 = vlaneseq
        %v900 = vshrl.u32 %v899, 7
        %v901 = vsub.s32 0, %v900
        %v902 = vrot.slane %v807, %v901
        %v903 = vmul.f32 %v902, %v816
        %v904 = vmul.f32 %v902, %v817
        %v905 = vmul.f32 %v862, %v903
        %v906 = vmul.f32 %v850, %v904
        %v907 = vmul.f32 %v863, %v903
        %v908 = vmul.f32 %v851, %v904
        %v909 = vmul.f32 %v864, %v903
        %v910 = vmul.f32 %v852, %v904
        %v911 = vmul.f32 %v865, %v903
        %v912 = vmul.f32 %v853, %v904
        %v913 = vmul.f32 %v866, %v903
        %v914 = vmul.f32 %v854, %v904
        %v915 = vmul.f32 %v867, %v903
        %v916 = vmul.f32 %v855, %v904
        %v917 = vmul.f32 %v868, %v903
        %v918 = vmul.f32 %v856, %v904
        %v919 = vmul.f32 %v869, %v903
        %v920 = vmul.f32 %v857, %v904
        %v921 = vmul.f32 %v870, %v903
        %v922 = vmul.f32 %v858, %v904
        %v923 = vmul.f32 %v871, %v903
        %v924 = vmul.f32 %v859, %v904
        %v925 = vadd.f32 %v879, %v905
        %v926 = vadd.f32 %v880, %v906
        %v927 = vadd.f32 %v881, %v907
        %v928 = vadd.f32 %v882, %v908
        %v929 = vadd.f32 %v883, %v909
        %v930 = vadd.f32 %v884, %v910
        %v931 = vadd.f32 %v885, %v911
        %v932 = vadd.f32 %v886, %v912
        %v933 = vadd.f32 %v887, %v913
        %v934 = vadd.f32 %v888, %v914
        %v935 = vadd.f32 %v889, %v915
        %v936 = vadd.f32 %v890, %v916
        %v937 = vadd.f32 %v891, %v917
        %v938 = vadd.f32 %v892, %v918
        %v939 = vadd.f32 %v893, %v919
        %v940 = vadd.f32 %v894, %v920
        %v941 = vadd.f32 %v895, %v921
        %v942 = vadd.f32 %v896, %v922
        %v943 = vadd.f32 %v897, %v923
        %v944 = vadd.f32 %v898, %v924
        %v945 = vlaneseq
        %v946 = vshrl.u32 %v945, 7
        %v947 = vsub.s32 0, %v946
        %v948 = vrot.slane %v808, %v947
        %v949 = vmul.f32 %v948, %v816
        %v950 = vmul.f32 %v948, %v817
        %v951 = vmul.f32 %v863, %v949
        %v952 = vmul.f32 %v851, %v950
        %v953 = vmul.f32 %v864, %v949
        %v954 = vmul.f32 %v852, %v950
        %v955 = vmul.f32 %v865, %v949
        %v956 = vmul.f32 %v853, %v950
        %v957 = vmul.f32 %v866, %v949
        %v958 = vmul.f32 %v854, %v950
        %v959 = vmul.f32 %v867, %v949
        %v960 = vmul.f32 %v855, %v950
        %v961 = vmul.f32 %v868, %v949
        %v962 = vmul.f32 %v856, %v950
        %v963 = vmul.f32 %v869, %v949
        %v964 = vmul.f32 %v857, %v950
        %v965 = vmul.f32 %v870, %v949
        %v966 = vmul.f32 %v858, %v950
        %v967 = vmul.f32 %v871, %v949
        %v968 = vmul.f32 %v859, %v950
        %v969 = vmul.f32 %v872, %v949
        %v970 = vmul.f32 %v860, %v950
        %v971 = vadd.f32 %v925, %v951
        %v972 = vadd.f32 %v926, %v952
        %v973 = vadd.f32 %v927, %v953
        %v974 = vadd.f32 %v928, %v954
        %v975 = vadd.f32 %v929, %v955
        %v976 = vadd.f32 %v930, %v956
        %v977 = vadd.f32 %v931, %v957
        %v978 = vadd.f32 %v932, %v958
        %v979 = vadd.f32 %v933, %v959
        %v980 = vadd.f32 %v934, %v960
        %v981 = vadd.f32 %v935, %v961
        %v982 = vadd.f32 %v936, %v962
        %v983 = vadd.f32 %v937, %v963
        %v984 = vadd.f32 %v938, %v964
        %v985 = vadd.f32 %v939, %v965
        %v986 = vadd.f32 %v940, %v966
        %v987 = vadd.f32 %v941, %v967
        %v988 = vadd.f32 %v942, %v968
        %v989 = vadd.f32 %v943, %v969
        %v990 = vadd.f32 %v944, %v970
        %v991 = vlaneseq
        %v992 = vshrl.u32 %v991, 7
        %v993 = vsub.s32 1, %v992
        %v994 = vrot.slane %v806, %v993
        %v995 = vmul.f32 %v782, %v994
        %v996 = vmul.f32 %v783, %v994
        %v997 = vmul.f32 %v784, %v994
        %v998 = vmul.f32 %v785, %v994
        %v999 = vmul.f32 %v786, %v994
        %v1000 = vmul.f32 %v787, %v994
        %v1001 = vmul.f32 %v788, %v994
        %v1002 = vmul.f32 %v789, %v994
        %v1003 = vmul.f32 %v790, %v994
        %v1004 = vmul.f32 %v791, %v994
        %v1005 = vmul.f32 %v792, %v994
        %v1006 = vmul.f32 %v793, %v994
        %v1007 = vmul.f32 %v794, %v994
        %v1008 = vmul.f32 %v795, %v994
        %v1009 = vmul.f32 %v796, %v994
        %v1010 = vmul.f32 %v797, %v994
        %v1011 = vmul.f32 %v798, %v994
        %v1012 = vmul.f32 %v799, %v994
        %v1013 = vmul.f32 %v800, %v994
        %v1014 = vmul.f32 %v801, %v994
        %v1015 = vadd.f32 %v971, %v995
        %v1016 = vadd.f32 %v972, %v996
        %v1017 = vadd.f32 %v973, %v997
        %v1018 = vadd.f32 %v974, %v998
        %v1019 = vadd.f32 %v975, %v999
        %v1020 = vadd.f32 %v976, %v1000
        %v1021 = vadd.f32 %v977, %v1001
        %v1022 = vadd.f32 %v978, %v1002
        %v1023 = vadd.f32 %v979, %v1003
        %v1024 = vadd.f32 %v980, %v1004
        %v1025 = vadd.f32 %v981, %v1005
        %v1026 = vadd.f32 %v982, %v1006
        %v1027 = vadd.f32 %v983, %v1007
        %v1028 = vadd.f32 %v984, %v1008
        %v1029 = vadd.f32 %v985, %v1009
        %v1030 = vadd.f32 %v986, %v1010
        %v1031 = vadd.f32 %v987, %v1011
        %v1032 = vadd.f32 %v988, %v1012
        %v1033 = vadd.f32 %v989, %v1013
        %v1034 = vadd.f32 %v990, %v1014
        %v1035 = vlaneseq
        %v1036 = vshrl.u32 %v1035, 7
        %v1037 = vsub.s32 1, %v1036
        %v1038 = vrot.slane %v807, %v1037
        %v1039 = vmul.f32 %v784, %v1038
        %v1040 = vmul.f32 %v785, %v1038
        %v1041 = vmul.f32 %v786, %v1038
        %v1042 = vmul.f32 %v787, %v1038
        %v1043 = vmul.f32 %v788, %v1038
        %v1044 = vmul.f32 %v789, %v1038
        %v1045 = vmul.f32 %v790, %v1038
        %v1046 = vmul.f32 %v791, %v1038
        %v1047 = vmul.f32 %v792, %v1038
        %v1048 = vmul.f32 %v793, %v1038
        %v1049 = vmul.f32 %v794, %v1038
        %v1050 = vmul.f32 %v795, %v1038
        %v1051 = vmul.f32 %v796, %v1038
        %v1052 = vmul.f32 %v797, %v1038
        %v1053 = vmul.f32 %v798, %v1038
        %v1054 = vmul.f32 %v799, %v1038
        %v1055 = vmul.f32 %v800, %v1038
        %v1056 = vmul.f32 %v801, %v1038
        %v1057 = vmul.f32 %v802, %v1038
        %v1058 = vmul.f32 %v803, %v1038
        %v1059 = vadd.f32 %v1015, %v1039
        %v1060 = vadd.f32 %v1016, %v1040
        %v1061 = vadd.f32 %v1017, %v1041
        %v1062 = vadd.f32 %v1018, %v1042
        %v1063 = vadd.f32 %v1019, %v1043
        %v1064 = vadd.f32 %v1020, %v1044
        %v1065 = vadd.f32 %v1021, %v1045
        %v1066 = vadd.f32 %v1022, %v1046
        %v1067 = vadd.f32 %v1023, %v1047
        %v1068 = vadd.f32 %v1024, %v1048
        %v1069 = vadd.f32 %v1025, %v1049
        %v1070 = vadd.f32 %v1026, %v1050
        %v1071 = vadd.f32 %v1027, %v1051
        %v1072 = vadd.f32 %v1028, %v1052
        %v1073 = vadd.f32 %v1029, %v1053
        %v1074 = vadd.f32 %v1030, %v1054
        %v1075 = vadd.f32 %v1031, %v1055
        %v1076 = vadd.f32 %v1032, %v1056
        %v1077 = vadd.f32 %v1033, %v1057
        %v1078 = vadd.f32 %v1034, %v1058
        %v1079 = vlaneseq
        %v1080 = vshrl.u32 %v1079, 7
        %v1081 = vsub.s32 1, %v1080
        %v1082 = vrot.slane %v808, %v1081
        %v1083 = vmul.f32 %v786, %v1082
        %v1084 = vmul.f32 %v787, %v1082
        %v1085 = vmul.f32 %v788, %v1082
        %v1086 = vmul.f32 %v789, %v1082
        %v1087 = vmul.f32 %v790, %v1082
        %v1088 = vmul.f32 %v791, %v1082
        %v1089 = vmul.f32 %v792, %v1082
        %v1090 = vmul.f32 %v793, %v1082
        %v1091 = vmul.f32 %v794, %v1082
        %v1092 = vmul.f32 %v795, %v1082
        %v1093 = vmul.f32 %v796, %v1082
        %v1094 = vmul.f32 %v797, %v1082
        %v1095 = vmul.f32 %v798, %v1082
        %v1096 = vmul.f32 %v799, %v1082
        %v1097 = vmul.f32 %v800, %v1082
        %v1098 = vmul.f32 %v801, %v1082
        %v1099 = vmul.f32 %v802, %v1082
        %v1100 = vmul.f32 %v803, %v1082
        %v1101 = vmul.f32 %v804, %v1082
        %v1102 = vmul.f32 %v805, %v1082
        %v1103 = vadd.f32 %v1059, %v1083
        %v1104 = vadd.f32 %v1060, %v1084
        %v1105 = vadd.f32 %v1061, %v1085
        %v1106 = vadd.f32 %v1062, %v1086
        %v1107 = vadd.f32 %v1063, %v1087
        %v1108 = vadd.f32 %v1064, %v1088
        %v1109 = vadd.f32 %v1065, %v1089
        %v1110 = vadd.f32 %v1066, %v1090
        %v1111 = vadd.f32 %v1067, %v1091
        %v1112 = vadd.f32 %v1068, %v1092
        %v1113 = vadd.f32 %v1069, %v1093
        %v1114 = vadd.f32 %v1070, %v1094
        %v1115 = vadd.f32 %v1071, %v1095
        %v1116 = vadd.f32 %v1072, %v1096
        %v1117 = vadd.f32 %v1073, %v1097
        %v1118 = vadd.f32 %v1074, %v1098
        %v1119 = vadd.f32 %v1075, %v1099
        %v1120 = vadd.f32 %v1076, %v1100
        %v1121 = vadd.f32 %v1077, %v1101
        %v1122 = vadd.f32 %v1078, %v1102
        %v1123 = vrot.slane %v782, 1
        %v1124 = vrot.slane %v784, 1
        %v1125 = vrot.slane %v786, 1
        %v1126 = vrot.slane %v788, 1
        %v1127 = vrot.slane %v790, 1
        %v1128 = vrot.slane %v792, 1
        %v1129 = vrot.slane %v794, 1
        %v1130 = vrot.slane %v796, 1
        %v1131 = vrot.slane %v798, 1
        %v1132 = vrot.slane %v800, 1
        %v1133 = vrot.slane %v802, 1
        %v1134 = vrot.slane %v804, 1
        %v1135 = vrot.slane %v783, 1
        %v1136 = vrot.slane %v785, 1
        %v1137 = vrot.slane %v787, 1
        %v1138 = vrot.slane %v789, 1
        %v1139 = vrot.slane %v791, 1
        %v1140 = vrot.slane %v793, 1
        %v1141 = vrot.slane %v795, 1
        %v1142 = vrot.slane %v797, 1
        %v1143 = vrot.slane %v799, 1
        %v1144 = vrot.slane %v801, 1
        %v1145 = vrot.slane %v803, 1
        %v1146 = vrot.slane %v805, 1
        %vm1147 = vcmp.lt.s32.totalorder %v810, 7
        %v1148 = vsel %vm1147, %v1123, %v1135
        %v1149 = vsel %vm1147, %v1124, %v1136
        %v1150 = vsel %vm1147, %v1125, %v1137
        %v1151 = vsel %vm1147, %v1126, %v1138
        %v1152 = vsel %vm1147, %v1127, %v1139
        %v1153 = vsel %vm1147, %v1128, %v1140
        %v1154 = vsel %vm1147, %v1129, %v1141
        %v1155 = vsel %vm1147, %v1130, %v1142
        %v1156 = vsel %vm1147, %v1131, %v1143
        %v1157 = vsel %vm1147, %v1132, %v1144
        %v1158 = vsel %vm1147, %v1133, %v1145
        %v1159 = vsel %vm1147, %v1134, %v1146
        %v1160 = vsel %vm1147, %v1135, %v1123
        %v1161 = vsel %vm1147, %v1136, %v1124
        %v1162 = vsel %vm1147, %v1137, %v1125
        %v1163 = vsel %vm1147, %v1138, %v1126
        %v1164 = vsel %vm1147, %v1139, %v1127
        %v1165 = vsel %vm1147, %v1140, %v1128
        %v1166 = vsel %vm1147, %v1141, %v1129
        %v1167 = vsel %vm1147, %v1142, %v1130
        %v1168 = vsel %vm1147, %v1143, %v1131
        %v1169 = vsel %vm1147, %v1144, %v1132
        %v1170 = vsel %vm1147, %v1145, %v1133
        %v1171 = vsel %vm1147, %v1146, %v1134
        %v1172 = vlaneseq
        %v1173 = vshrl.u32 %v1172, 7
        %v1174 = vsub.s32 2, %v1173
        %v1175 = vrot.slane %v806, %v1174
        %v1176 = vmul.f32 %v1175, %v822
        %v1177 = vmul.f32 %v1175, %v823
        %v1178 = vmul.f32 %v1148, %v1176
        %v1179 = vmul.f32 %v1160, %v1177
        %v1180 = vmul.f32 %v1149, %v1176
        %v1181 = vmul.f32 %v1161, %v1177
        %v1182 = vmul.f32 %v1150, %v1176
        %v1183 = vmul.f32 %v1162, %v1177
        %v1184 = vmul.f32 %v1151, %v1176
        %v1185 = vmul.f32 %v1163, %v1177
        %v1186 = vmul.f32 %v1152, %v1176
        %v1187 = vmul.f32 %v1164, %v1177
        %v1188 = vmul.f32 %v1153, %v1176
        %v1189 = vmul.f32 %v1165, %v1177
        %v1190 = vmul.f32 %v1154, %v1176
        %v1191 = vmul.f32 %v1166, %v1177
        %v1192 = vmul.f32 %v1155, %v1176
        %v1193 = vmul.f32 %v1167, %v1177
        %v1194 = vmul.f32 %v1156, %v1176
        %v1195 = vmul.f32 %v1168, %v1177
        %v1196 = vmul.f32 %v1157, %v1176
        %v1197 = vmul.f32 %v1169, %v1177
        %v1198 = vadd.f32 %v1103, %v1178
        %v1199 = vadd.f32 %v1104, %v1179
        %v1200 = vadd.f32 %v1105, %v1180
        %v1201 = vadd.f32 %v1106, %v1181
        %v1202 = vadd.f32 %v1107, %v1182
        %v1203 = vadd.f32 %v1108, %v1183
        %v1204 = vadd.f32 %v1109, %v1184
        %v1205 = vadd.f32 %v1110, %v1185
        %v1206 = vadd.f32 %v1111, %v1186
        %v1207 = vadd.f32 %v1112, %v1187
        %v1208 = vadd.f32 %v1113, %v1188
        %v1209 = vadd.f32 %v1114, %v1189
        %v1210 = vadd.f32 %v1115, %v1190
        %v1211 = vadd.f32 %v1116, %v1191
        %v1212 = vadd.f32 %v1117, %v1192
        %v1213 = vadd.f32 %v1118, %v1193
        %v1214 = vadd.f32 %v1119, %v1194
        %v1215 = vadd.f32 %v1120, %v1195
        %v1216 = vadd.f32 %v1121, %v1196
        %v1217 = vadd.f32 %v1122, %v1197
        %v1218 = vlaneseq
        %v1219 = vshrl.u32 %v1218, 7
        %v1220 = vsub.s32 2, %v1219
        %v1221 = vrot.slane %v807, %v1220
        %v1222 = vmul.f32 %v1221, %v822
        %v1223 = vmul.f32 %v1221, %v823
        %v1224 = vmul.f32 %v1149, %v1222
        %v1225 = vmul.f32 %v1161, %v1223
        %v1226 = vmul.f32 %v1150, %v1222
        %v1227 = vmul.f32 %v1162, %v1223
        %v1228 = vmul.f32 %v1151, %v1222
        %v1229 = vmul.f32 %v1163, %v1223
        %v1230 = vmul.f32 %v1152, %v1222
        %v1231 = vmul.f32 %v1164, %v1223
        %v1232 = vmul.f32 %v1153, %v1222
        %v1233 = vmul.f32 %v1165, %v1223
        %v1234 = vmul.f32 %v1154, %v1222
        %v1235 = vmul.f32 %v1166, %v1223
        %v1236 = vmul.f32 %v1155, %v1222
        %v1237 = vmul.f32 %v1167, %v1223
        %v1238 = vmul.f32 %v1156, %v1222
        %v1239 = vmul.f32 %v1168, %v1223
        %v1240 = vmul.f32 %v1157, %v1222
        %v1241 = vmul.f32 %v1169, %v1223
        %v1242 = vmul.f32 %v1158, %v1222
        %v1243 = vmul.f32 %v1170, %v1223
        %v1244 = vadd.f32 %v1198, %v1224
        %v1245 = vadd.f32 %v1199, %v1225
        %v1246 = vadd.f32 %v1200, %v1226
        %v1247 = vadd.f32 %v1201, %v1227
        %v1248 = vadd.f32 %v1202, %v1228
        %v1249 = vadd.f32 %v1203, %v1229
        %v1250 = vadd.f32 %v1204, %v1230
        %v1251 = vadd.f32 %v1205, %v1231
        %v1252 = vadd.f32 %v1206, %v1232
        %v1253 = vadd.f32 %v1207, %v1233
        %v1254 = vadd.f32 %v1208, %v1234
        %v1255 = vadd.f32 %v1209, %v1235
        %v1256 = vadd.f32 %v1210, %v1236
        %v1257 = vadd.f32 %v1211, %v1237
        %v1258 = vadd.f32 %v1212, %v1238
        %v1259 = vadd.f32 %v1213, %v1239
        %v1260 = vadd.f32 %v1214, %v1240
        %v1261 = vadd.f32 %v1215, %v1241
        %v1262 = vadd.f32 %v1216, %v1242
        %v1263 = vadd.f32 %v1217, %v1243
        %v1264 = vlaneseq
        %v1265 = vshrl.u32 %v1264, 7
        %v1266 = vsub.s32 2, %v1265
        %v1267 = vrot.slane %v808, %v1266
        %v1268 = vmul.f32 %v1267, %v822
        %v1269 = vmul.f32 %v1267, %v823
        %v1270 = vmul.f32 %v1150, %v1268
        %v1271 = vmul.f32 %v1162, %v1269
        %v1272 = vmul.f32 %v1151, %v1268
        %v1273 = vmul.f32 %v1163, %v1269
        %v1274 = vmul.f32 %v1152, %v1268
        %v1275 = vmul.f32 %v1164, %v1269
        %v1276 = vmul.f32 %v1153, %v1268
        %v1277 = vmul.f32 %v1165, %v1269
        %v1278 = vmul.f32 %v1154, %v1268
        %v1279 = vmul.f32 %v1166, %v1269
        %v1280 = vmul.f32 %v1155, %v1268
        %v1281 = vmul.f32 %v1167, %v1269
        %v1282 = vmul.f32 %v1156, %v1268
        %v1283 = vmul.f32 %v1168, %v1269
        %v1284 = vmul.f32 %v1157, %v1268
        %v1285 = vmul.f32 %v1169, %v1269
        %v1286 = vmul.f32 %v1158, %v1268
        %v1287 = vmul.f32 %v1170, %v1269
        %v1288 = vmul.f32 %v1159, %v1268
        %v1289 = vmul.f32 %v1171, %v1269
        %v1290 = vadd.f32 %v1244, %v1270
        %v1291 = vadd.f32 %v1245, %v1271
        %v1292 = vadd.f32 %v1246, %v1272
        %v1293 = vadd.f32 %v1247, %v1273
        %v1294 = vadd.f32 %v1248, %v1274
        %v1295 = vadd.f32 %v1249, %v1275
        %v1296 = vadd.f32 %v1250, %v1276
        %v1297 = vadd.f32 %v1251, %v1277
        %v1298 = vadd.f32 %v1252, %v1278
        %v1299 = vadd.f32 %v1253, %v1279
        %v1300 = vadd.f32 %v1254, %v1280
        %v1301 = vadd.f32 %v1255, %v1281
        %v1302 = vadd.f32 %v1256, %v1282
        %v1303 = vadd.f32 %v1257, %v1283
        %v1304 = vadd.f32 %v1258, %v1284
        %v1305 = vadd.f32 %v1259, %v1285
        %v1306 = vadd.f32 %v1260, %v1286
        %v1307 = vadd.f32 %v1261, %v1287
        %v1308 = vadd.f32 %v1262, %v1288
        %v1309 = vadd.f32 %v1263, %v1289
        %v1310 = vld [vmem:[%s6] sm:$0x1]
        %v1312 = vlaneseq
        %v1313 = vshrl.u32 %v1312, 7
        %v1314 = vsub.s32 0, %v1313
        %v1315 = vrot.slane %v1310, %v1314
        %v1317 = vadd.f32 %v1290, %v1315
        %v1318 = vadd.f32 %v1291, %v1315
        %v1319 = vadd.f32 %v1292, %v1315
        %v1320 = vadd.f32 %v1293, %v1315
        %v1321 = vadd.f32 %v1294, %v1315
        %v1322 = vadd.f32 %v1295, %v1315
        %v1323 = vadd.f32 %v1296, %v1315
        %v1324 = vadd.f32 %v1297, %v1315
        %v1325 = vadd.f32 %v1298, %v1315
        %v1326 = vadd.f32 %v1299, %v1315
        %v1327 = vadd.f32 %v1300, %v1315
        %v1328 = vadd.f32 %v1301, %v1315
        %v1329 = vadd.f32 %v1302, %v1315
        %v1330 = vadd.f32 %v1303, %v1315
        %v1331 = vadd.f32 %v1304, %v1315
        %v1332 = vadd.f32 %v1305, %v1315
        %v1333 = vadd.f32 %v1306, %v1315
        %v1334 = vadd.f32 %v1307, %v1315
        %v1335 = vadd.f32 %v1308, %v1315
        %v1336 = vadd.f32 %v1309, %v1315
        %v1337 = vpack.c.bf16 %v1318, %v1317
        %v1338 = vpack.c.bf16 %v1320, %v1319
        %v1339 = vpack.c.bf16 %v1322, %v1321
        %v1340 = vpack.c.bf16 %v1324, %v1323
        %v1341 = vpack.c.bf16 %v1326, %v1325
        %v1342 = vpack.c.bf16 %v1328, %v1327
        %v1343 = vpack.c.bf16 %v1330, %v1329
        %v1344 = vpack.c.bf16 %v1332, %v1331
        %v1345 = vpack.c.bf16 %v1334, %v1333
        %v1346 = vpack.c.bf16 %v1336, %v1335
        %v1347 = vld [vmem:[%s7] sm:$0xf]
        %v1348 = vld [vmem:[%s8] sm:$0x1]
        %v1350 = vlaneseq
        %v1351 = vshrl.u32 %v1350, 7
        %v1352 = vsub.s32 0, %v1351
        %v1353 = vrot.slane %v1348, %v1352
        %vm1355 = vcmask 64512
        %v1357 = vsel %vm1355, %v1337, 0
        %v1360 = vsel %vm1355, %v1338, 0
        %v1363 = vsel %vm1355, %v1339, 0
        %v1366 = vsel %vm1355, %v1340, 0
        %v1369 = vsel %vm1355, %v1341, 0
        %v1372 = vsel %vm1355, %v1342, 0
        %v1375 = vsel %vm1355, %v1343, 0
        %v1378 = vsel %vm1355, %v1344, 0
        %v1381 = vsel %vm1355, %v1345, 0
        %v1384 = vsel %vm1355, %v1346, 0
        %vm1386 = vcmask 1043456
        %v1388 = vsel %vm1386, %v1347, 0
        %1390 = vmatprep.subr.bf16.mxu0 0
        %1391 = vmatpush1.bf16.msra.mxu0 %v1388
        %1392 = vmatprep.subr.bf16.mxu0 0
        %1393 = vmatpush1.bf16.msra.mxu0 0
        %1394 = vmatprep.subr.bf16.mxu0 0
        %1395 = vmatpush1.bf16.msra.mxu0 0
        %1396 = vmatprep.subr.bf16.mxu0 0
        %1397 = vmatpush1.bf16.msra.mxu0 0
        %1398 = vmatprep.subr.bf16.mxu0 0
        %1399 = vmatpush1.bf16.msra.mxu0 0
        %1400 = vmatprep.subr.bf16.mxu0 0
        %1401 = vmatpush1.bf16.msra.mxu0 0
        %1402 = vmatprep.subr.bf16.mxu0 0
        %1403 = vmatpush1.bf16.msra.mxu0 0
        %1404 = vmatprep.subr.bf16.mxu0 0
        %1405 = vmatpush1.bf16.msra.mxu0 0
        %1406 = vmatprep.subr.bf16.mxu0 0
        %1407 = vmatpush1.bf16.msra.mxu0 0
        %1408 = vmatprep.subr.bf16.mxu0 0
        %1409 = vmatpush1.bf16.msra.mxu0 0
        %1410 = vmatprep.subr.bf16.mxu0 0
        %1411 = vmatpush1.bf16.msra.mxu0 0
        %1412 = vmatprep.subr.bf16.mxu0 0
        %1413 = vmatpush1.bf16.msra.mxu0 0
        %1414 = vmatprep.subr.bf16.mxu0 0
        %1415 = vmatpush1.bf16.msra.mxu0 0
        %1416 = vmatprep.subr.bf16.mxu0 0
        %1417 = vmatpush1.bf16.msra.mxu0 0
        %1418 = vmatprep.subr.bf16.mxu0 0
        %1419 = vmatpush1.bf16.msra.mxu0 0
        %1420 = vmatprep.subr.bf16.mxu0 0
        %1421 = vmatpush1.bf16.msra.mxu0 0
        %1422 = vmatprep.mubr.bf16.mxu0 0
        %1423 = vmatmul.mubr.bf16.gmra.mrb[0].mxu0 %v1357
        %v1424 = vpop.f32.mrb[0].mxu0
        %v1425 = vadd.f32 %v1353, %v1424
        %v1426 = vpop.f32.mrb[0].mxu0
        %v1427 = vpop.f32.mrb[0].mxu0
        %v1428 = vadd.f32 %v1353, %v1427
        %v1429 = vpop.f32.mrb[0].mxu0
        %1430 = vmatprep.mubr.bf16.mxu0 0
        %1431 = vmatmul.mubr.bf16.gmra.mrb[0].mxu0 %v1360
        %v1432 = vpop.f32.mrb[0].mxu0
        %v1433 = vadd.f32 %v1353, %v1432
        %v1434 = vpop.f32.mrb[0].mxu0
        %v1435 = vpop.f32.mrb[0].mxu0
        %v1436 = vadd.f32 %v1353, %v1435
        %v1437 = vpop.f32.mrb[0].mxu0
        %1438 = vmatprep.mubr.bf16.mxu0 0
        %1439 = vmatmul.mubr.bf16.gmra.mrb[0].mxu0 %v1363
        %v1440 = vpop.f32.mrb[0].mxu0
        %v1441 = vadd.f32 %v1353, %v1440
        %v1442 = vpop.f32.mrb[0].mxu0
        %v1443 = vpop.f32.mrb[0].mxu0
        %v1444 = vadd.f32 %v1353, %v1443
        %v1445 = vpop.f32.mrb[0].mxu0
        %1446 = vmatprep.mubr.bf16.mxu0 0
        %1447 = vmatmul.mubr.bf16.gmra.mrb[0].mxu0 %v1366
        %v1448 = vpop.f32.mrb[0].mxu0
        %v1449 = vadd.f32 %v1353, %v1448
        %v1450 = vpop.f32.mrb[0].mxu0
        %v1451 = vpop.f32.mrb[0].mxu0
        %v1452 = vadd.f32 %v1353, %v1451
        %v1453 = vpop.f32.mrb[0].mxu0
        %1454 = vmatprep.mubr.bf16.mxu0 0
        %1455 = vmatmul.mubr.bf16.gmra.mrb[0].mxu0 %v1369
        %v1456 = vpop.f32.mrb[0].mxu0
        %v1457 = vadd.f32 %v1353, %v1456
        %v1458 = vpop.f32.mrb[0].mxu0
        %v1459 = vpop.f32.mrb[0].mxu0
        %v1460 = vadd.f32 %v1353, %v1459
        %v1461 = vpop.f32.mrb[0].mxu0
        %1462 = vmatprep.mubr.bf16.mxu0 0
        %1463 = vmatmul.mubr.bf16.gmra.mrb[0].mxu0 %v1372
        %v1464 = vpop.f32.mrb[0].mxu0
        %v1465 = vadd.f32 %v1353, %v1464
        %v1466 = vpop.f32.mrb[0].mxu0
        %v1467 = vpop.f32.mrb[0].mxu0
        %v1468 = vadd.f32 %v1353, %v1467
        %v1469 = vpop.f32.mrb[0].mxu0
        %1470 = vmatprep.mubr.bf16.mxu0 0
        %1471 = vmatmul.mubr.bf16.gmra.mrb[0].mxu0 %v1375
        %v1472 = vpop.f32.mrb[0].mxu0
        %v1473 = vadd.f32 %v1353, %v1472
        %v1474 = vpop.f32.mrb[0].mxu0
        %v1475 = vpop.f32.mrb[0].mxu0
        %v1476 = vadd.f32 %v1353, %v1475
        %v1477 = vpop.f32.mrb[0].mxu0
        %1478 = vmatprep.mubr.bf16.mxu0 0
        %1479 = vmatmul.mubr.bf16.gmra.mrb[0].mxu0 %v1378
        %v1480 = vpop.f32.mrb[0].mxu0
        %v1481 = vadd.f32 %v1353, %v1480
        %v1482 = vpop.f32.mrb[0].mxu0
        %v1483 = vpop.f32.mrb[0].mxu0
        %v1484 = vadd.f32 %v1353, %v1483
        %v1485 = vpop.f32.mrb[0].mxu0
        %1486 = vmatprep.mubr.bf16.mxu0 0
        %1487 = vmatmul.mubr.bf16.gmra.mrb[0].mxu0 %v1381
        %v1488 = vpop.f32.mrb[0].mxu0
        %v1489 = vadd.f32 %v1353, %v1488
        %v1490 = vpop.f32.mrb[0].mxu0
        %v1491 = vpop.f32.mrb[0].mxu0
        %v1492 = vadd.f32 %v1353, %v1491
        %v1493 = vpop.f32.mrb[0].mxu0
        %1494 = vmatprep.mubr.bf16.mxu0 0
        %1495 = vmatmul.mubr.bf16.gmra.mrb[0].mxu0 %v1384
        %v1496 = vpop.f32.mrb[0].mxu0
        %v1497 = vadd.f32 %v1353, %v1496
        %v1498 = vpop.f32.mrb[0].mxu0
        %v1499 = vpop.f32.mrb[0].mxu0
        %v1500 = vadd.f32 %v1353, %v1499
        %v1501 = vpop.f32.mrb[0].mxu0
        %1502 = vdwg.mxu0
        %v1503 = vstv %s741
        %v1504 = vadd.s32 %v1503, 1
        %v1505 = vadd.s32 %v1503, 2
        %v1506 = vadd.s32 %v1503, 3
        %v1507 = vadd.s32 %v1503, 4
        %v1508 = vadd.s32 %v1503, 5
        %v1509 = vadd.s32 %v1503, 6
        %v1510 = vadd.s32 %v1503, 7
        %v1511 = vadd.s32 %v1503, 8
        %v1512 = vadd.s32 %v1503, 9
        %vm1513 = vcmp.ge.s32.totalorder %v1503, 0
        %vm1514 = vcmp.ge.s32.totalorder %v1504, 0
        %vm1515 = vcmp.ge.s32.totalorder %v1505, 0
        %vm1516 = vcmp.ge.s32.totalorder %v1506, 0
        %vm1517 = vcmp.ge.s32.totalorder %v1507, 0
        %vm1518 = vcmp.ge.s32.totalorder %v1508, 0
        %vm1519 = vcmp.ge.s32.totalorder %v1509, 0
        %vm1520 = vcmp.ge.s32.totalorder %v1510, 0
        %vm1521 = vcmp.ge.s32.totalorder %v1511, 0
        %vm1522 = vcmp.ge.s32.totalorder %v1512, 0
        %vm1523 = vcmp.lt.s32.totalorder %v1503, 16
        %vm1524 = vcmp.lt.s32.totalorder %v1504, 16
        %vm1525 = vcmp.lt.s32.totalorder %v1505, 16
        %vm1526 = vcmp.lt.s32.totalorder %v1506, 16
        %vm1527 = vcmp.lt.s32.totalorder %v1507, 16
        %vm1528 = vcmp.lt.s32.totalorder %v1508, 16
        %vm1529 = vcmp.lt.s32.totalorder %v1509, 16
        %vm1530 = vcmp.lt.s32.totalorder %v1510, 16
        %vm1531 = vcmp.lt.s32.totalorder %v1511, 16
        %vm1532 = vcmp.lt.s32.totalorder %v1512, 16
        %vm1533 = vmand %vm1513, %vm1523
        %vm1534 = vmand %vm1514, %vm1524
        %vm1535 = vmand %vm1515, %vm1525
        %vm1536 = vmand %vm1516, %vm1526
        %vm1537 = vmand %vm1517, %vm1527
        %vm1538 = vmand %vm1518, %vm1528
        %vm1539 = vmand %vm1519, %vm1529
        %vm1540 = vmand %vm1520, %vm1530
        %vm1541 = vmand %vm1521, %vm1531
        %vm1542 = vmand %vm1522, %vm1532
        %v1543 = vsel %vm1533, 1, 0
        %v1544 = vsel %vm1534, 1, 0
        %v1545 = vsel %vm1535, 1, 0
        %v1546 = vsel %vm1536, 1, 0
        %v1547 = vsel %vm1537, 1, 0
        %v1548 = vsel %vm1538, 1, 0
        %v1549 = vsel %vm1539, 1, 0
        %v1550 = vsel %vm1540, 1, 0
        %v1551 = vsel %vm1541, 1, 0
        %v1552 = vsel %vm1542, 1, 0
        %vm1553 = vcmp.eq.s32.totalorder %v1543, 1
        %vm1554 = vcmp.eq.s32.totalorder %v1544, 1
        %vm1555 = vcmp.eq.s32.totalorder %v1545, 1
        %vm1556 = vcmp.eq.s32.totalorder %v1546, 1
        %vm1557 = vcmp.eq.s32.totalorder %v1547, 1
        %vm1558 = vcmp.eq.s32.totalorder %v1548, 1
        %vm1559 = vcmp.eq.s32.totalorder %v1549, 1
        %vm1560 = vcmp.eq.s32.totalorder %v1550, 1
        %vm1561 = vcmp.eq.s32.totalorder %v1551, 1
        %vm1562 = vcmp.eq.s32.totalorder %v1552, 1
        %v1563 = vsel %vm1553, %v1425, 0.0
        %v1564 = vsel %vm1553, %v1428, 0.0
        %v1565 = vsel %vm1554, %v1433, 0.0
        %v1566 = vsel %vm1554, %v1436, 0.0
        %v1567 = vsel %vm1555, %v1441, 0.0
        %v1568 = vsel %vm1555, %v1444, 0.0
        %v1569 = vsel %vm1556, %v1449, 0.0
        %v1570 = vsel %vm1556, %v1452, 0.0
        %v1571 = vsel %vm1557, %v1457, 0.0
        %v1572 = vsel %vm1557, %v1460, 0.0
        %v1573 = vsel %vm1558, %v1465, 0.0
        %v1574 = vsel %vm1558, %v1468, 0.0
        %v1575 = vsel %vm1559, %v1473, 0.0
        %v1576 = vsel %vm1559, %v1476, 0.0
        %v1577 = vsel %vm1560, %v1481, 0.0
        %v1578 = vsel %vm1560, %v1484, 0.0
        %v1579 = vsel %vm1561, %v1489, 0.0
        %v1580 = vsel %vm1561, %v1492, 0.0
        %v1581 = vsel %vm1562, %v1497, 0.0
        %v1582 = vsel %vm1562, %v1500, 0.0
        %v1583 = vmax.f32 %v1563, 0.0
        %v1584 = vmax.f32 %v1564, 0.0
        %v1585 = vmax.f32 %v1565, 0.0
        %v1586 = vmax.f32 %v1566, 0.0
        %v1587 = vmax.f32 %v1567, 0.0
        %v1588 = vmax.f32 %v1568, 0.0
        %v1589 = vmax.f32 %v1569, 0.0
        %v1590 = vmax.f32 %v1570, 0.0
        %v1591 = vmax.f32 %v1571, 0.0
        %v1592 = vmax.f32 %v1572, 0.0
        %v1593 = vmax.f32 %v1573, 0.0
        %v1594 = vmax.f32 %v1574, 0.0
        %v1595 = vmax.f32 %v1575, 0.0
        %v1596 = vmax.f32 %v1576, 0.0
        %v1597 = vmax.f32 %v1577, 0.0
        %v1598 = vmax.f32 %v1578, 0.0
        %v1599 = vmax.f32 %v1579, 0.0
        %v1600 = vmax.f32 %v1580, 0.0
        %v1601 = vmax.f32 %v1581, 0.0
        %v1602 = vmax.f32 %v1582, 0.0
        %v1603 = vld [vmem:[%s9] sm:$0x7]
        %v1604 = vld [vmem:[%s9 + $0x4] sm:$0x7]
        %v1605 = vld [vmem:[%s9 + $0x8] sm:$0x7]
        %v1606 = vrot.slane %v1583, 7
        %v1607 = vrot.slane %v1585, 7
        %v1608 = vrot.slane %v1587, 7
        %v1609 = vrot.slane %v1589, 7
        %v1610 = vrot.slane %v1591, 7
        %v1611 = vrot.slane %v1593, 7
        %v1612 = vrot.slane %v1595, 7
        %v1613 = vrot.slane %v1597, 7
        %v1614 = vrot.slane %v1599, 7
        %v1615 = vrot.slane %v1601, 7
        %v1616 = vrot.slane %v1584, 7
        %v1617 = vrot.slane %v1586, 7
        %v1618 = vrot.slane %v1588, 7
        %v1619 = vrot.slane %v1590, 7
        %v1620 = vrot.slane %v1592, 7
        %v1621 = vrot.slane %v1594, 7
        %v1622 = vrot.slane %v1596, 7
        %v1623 = vrot.slane %v1598, 7
        %v1624 = vrot.slane %v1600, 7
        %v1625 = vrot.slane %v1602, 7
        %v1626 = vsel %vm848, %v1606, %v1616
        %v1627 = vsel %vm848, %v1607, %v1617
        %v1628 = vsel %vm848, %v1608, %v1618
        %v1629 = vsel %vm848, %v1609, %v1619
        %v1630 = vsel %vm848, %v1610, %v1620
        %v1631 = vsel %vm848, %v1611, %v1621
        %v1632 = vsel %vm848, %v1612, %v1622
        %v1633 = vsel %vm848, %v1613, %v1623
        %v1634 = vsel %vm848, %v1614, %v1624
        %v1635 = vsel %vm848, %v1615, %v1625
        %v1636 = vsel %vm848, %v1616, %v1606
        %v1637 = vsel %vm848, %v1617, %v1607
        %v1638 = vsel %vm848, %v1618, %v1608
        %v1639 = vsel %vm848, %v1619, %v1609
        %v1640 = vsel %vm848, %v1620, %v1610
        %v1641 = vsel %vm848, %v1621, %v1611
        %v1642 = vsel %vm848, %v1622, %v1612
        %v1643 = vsel %vm848, %v1623, %v1613
        %v1644 = vsel %vm848, %v1624, %v1614
        %v1645 = vsel %vm848, %v1625, %v1615
        %v1646 = vlaneseq
        %v1647 = vshrl.u32 %v1646, 7
        %v1648 = vsub.s32 0, %v1647
        %v1649 = vrot.slane %v1603, %v1648
        %v1650 = vmul.f32 %v1649, %v816
        %v1651 = vmul.f32 %v1649, %v817
        %v1652 = vmul.f32 %v1636, %v1650
        %v1653 = vmul.f32 %v1626, %v1651
        %v1654 = vmul.f32 %v1637, %v1650
        %v1655 = vmul.f32 %v1627, %v1651
        %v1656 = vmul.f32 %v1638, %v1650
        %v1657 = vmul.f32 %v1628, %v1651
        %v1658 = vmul.f32 %v1639, %v1650
        %v1659 = vmul.f32 %v1629, %v1651
        %v1660 = vmul.f32 %v1640, %v1650
        %v1661 = vmul.f32 %v1630, %v1651
        %v1662 = vmul.f32 %v1641, %v1650
        %v1663 = vmul.f32 %v1631, %v1651
        %v1664 = vmul.f32 %v1642, %v1650
        %v1665 = vmul.f32 %v1632, %v1651
        %v1666 = vmul.f32 %v1643, %v1650
        %v1667 = vmul.f32 %v1633, %v1651
        %v1668 = vlaneseq
        %v1669 = vshrl.u32 %v1668, 7
        %v1670 = vsub.s32 0, %v1669
        %v1671 = vrot.slane %v1604, %v1670
        %v1672 = vmul.f32 %v1671, %v816
        %v1673 = vmul.f32 %v1671, %v817
        %v1674 = vmul.f32 %v1637, %v1672
        %v1675 = vmul.f32 %v1627, %v1673
        %v1676 = vmul.f32 %v1638, %v1672
        %v1677 = vmul.f32 %v1628, %v1673
        %v1678 = vmul.f32 %v1639, %v1672
        %v1679 = vmul.f32 %v1629, %v1673
        %v1680 = vmul.f32 %v1640, %v1672
        %v1681 = vmul.f32 %v1630, %v1673
        %v1682 = vmul.f32 %v1641, %v1672
        %v1683 = vmul.f32 %v1631, %v1673
        %v1684 = vmul.f32 %v1642, %v1672
        %v1685 = vmul.f32 %v1632, %v1673
        %v1686 = vmul.f32 %v1643, %v1672
        %v1687 = vmul.f32 %v1633, %v1673
        %v1688 = vmul.f32 %v1644, %v1672
        %v1689 = vmul.f32 %v1634, %v1673
        %v1690 = vadd.f32 %v1652, %v1674
        %v1691 = vadd.f32 %v1653, %v1675
        %v1692 = vadd.f32 %v1654, %v1676
        %v1693 = vadd.f32 %v1655, %v1677
        %v1694 = vadd.f32 %v1656, %v1678
        %v1695 = vadd.f32 %v1657, %v1679
        %v1696 = vadd.f32 %v1658, %v1680
        %v1697 = vadd.f32 %v1659, %v1681
        %v1698 = vadd.f32 %v1660, %v1682
        %v1699 = vadd.f32 %v1661, %v1683
        %v1700 = vadd.f32 %v1662, %v1684
        %v1701 = vadd.f32 %v1663, %v1685
        %v1702 = vadd.f32 %v1664, %v1686
        %v1703 = vadd.f32 %v1665, %v1687
        %v1704 = vadd.f32 %v1666, %v1688
        %v1705 = vadd.f32 %v1667, %v1689
        %v1706 = vlaneseq
        %v1707 = vshrl.u32 %v1706, 7
        %v1708 = vsub.s32 0, %v1707
        %v1709 = vrot.slane %v1605, %v1708
        %v1710 = vmul.f32 %v1709, %v816
        %v1711 = vmul.f32 %v1709, %v817
        %v1712 = vmul.f32 %v1638, %v1710
        %v1713 = vmul.f32 %v1628, %v1711
        %v1714 = vmul.f32 %v1639, %v1710
        %v1715 = vmul.f32 %v1629, %v1711
        %v1716 = vmul.f32 %v1640, %v1710
        %v1717 = vmul.f32 %v1630, %v1711
        %v1718 = vmul.f32 %v1641, %v1710
        %v1719 = vmul.f32 %v1631, %v1711
        %v1720 = vmul.f32 %v1642, %v1710
        %v1721 = vmul.f32 %v1632, %v1711
        %v1722 = vmul.f32 %v1643, %v1710
        %v1723 = vmul.f32 %v1633, %v1711
        %v1724 = vmul.f32 %v1644, %v1710
        %v1725 = vmul.f32 %v1634, %v1711
        %v1726 = vmul.f32 %v1645, %v1710
        %v1727 = vmul.f32 %v1635, %v1711
        %v1728 = vadd.f32 %v1690, %v1712
        %v1729 = vadd.f32 %v1691, %v1713
        %v1730 = vadd.f32 %v1692, %v1714
        %v1731 = vadd.f32 %v1693, %v1715
        %v1732 = vadd.f32 %v1694, %v1716
        %v1733 = vadd.f32 %v1695, %v1717
        %v1734 = vadd.f32 %v1696, %v1718
        %v1735 = vadd.f32 %v1697, %v1719
        %v1736 = vadd.f32 %v1698, %v1720
        %v1737 = vadd.f32 %v1699, %v1721
        %v1738 = vadd.f32 %v1700, %v1722
        %v1739 = vadd.f32 %v1701, %v1723
        %v1740 = vadd.f32 %v1702, %v1724
        %v1741 = vadd.f32 %v1703, %v1725
        %v1742 = vadd.f32 %v1704, %v1726
        %v1743 = vadd.f32 %v1705, %v1727
        %v1744 = vlaneseq
        %v1745 = vshrl.u32 %v1744, 7
        %v1746 = vsub.s32 1, %v1745
        %v1747 = vrot.slane %v1603, %v1746
        %v1748 = vmul.f32 %v1583, %v1747
        %v1749 = vmul.f32 %v1584, %v1747
        %v1750 = vmul.f32 %v1585, %v1747
        %v1751 = vmul.f32 %v1586, %v1747
        %v1752 = vmul.f32 %v1587, %v1747
        %v1753 = vmul.f32 %v1588, %v1747
        %v1754 = vmul.f32 %v1589, %v1747
        %v1755 = vmul.f32 %v1590, %v1747
        %v1756 = vmul.f32 %v1591, %v1747
        %v1757 = vmul.f32 %v1592, %v1747
        %v1758 = vmul.f32 %v1593, %v1747
        %v1759 = vmul.f32 %v1594, %v1747
        %v1760 = vmul.f32 %v1595, %v1747
        %v1761 = vmul.f32 %v1596, %v1747
        %v1762 = vmul.f32 %v1597, %v1747
        %v1763 = vmul.f32 %v1598, %v1747
        %v1764 = vadd.f32 %v1728, %v1748
        %v1765 = vadd.f32 %v1729, %v1749
        %v1766 = vadd.f32 %v1730, %v1750
        %v1767 = vadd.f32 %v1731, %v1751
        %v1768 = vadd.f32 %v1732, %v1752
        %v1769 = vadd.f32 %v1733, %v1753
        %v1770 = vadd.f32 %v1734, %v1754
        %v1771 = vadd.f32 %v1735, %v1755
        %v1772 = vadd.f32 %v1736, %v1756
        %v1773 = vadd.f32 %v1737, %v1757
        %v1774 = vadd.f32 %v1738, %v1758
        %v1775 = vadd.f32 %v1739, %v1759
        %v1776 = vadd.f32 %v1740, %v1760
        %v1777 = vadd.f32 %v1741, %v1761
        %v1778 = vadd.f32 %v1742, %v1762
        %v1779 = vadd.f32 %v1743, %v1763
        %v1780 = vlaneseq
        %v1781 = vshrl.u32 %v1780, 7
        %v1782 = vsub.s32 1, %v1781
        %v1783 = vrot.slane %v1604, %v1782
        %v1784 = vmul.f32 %v1585, %v1783
        %v1785 = vmul.f32 %v1586, %v1783
        %v1786 = vmul.f32 %v1587, %v1783
        %v1787 = vmul.f32 %v1588, %v1783
        %v1788 = vmul.f32 %v1589, %v1783
        %v1789 = vmul.f32 %v1590, %v1783
        %v1790 = vmul.f32 %v1591, %v1783
        %v1791 = vmul.f32 %v1592, %v1783
        %v1792 = vmul.f32 %v1593, %v1783
        %v1793 = vmul.f32 %v1594, %v1783
        %v1794 = vmul.f32 %v1595, %v1783
        %v1795 = vmul.f32 %v1596, %v1783
        %v1796 = vmul.f32 %v1597, %v1783
        %v1797 = vmul.f32 %v1598, %v1783
        %v1798 = vmul.f32 %v1599, %v1783
        %v1799 = vmul.f32 %v1600, %v1783
        %v1800 = vadd.f32 %v1764, %v1784
        %v1801 = vadd.f32 %v1765, %v1785
        %v1802 = vadd.f32 %v1766, %v1786
        %v1803 = vadd.f32 %v1767, %v1787
        %v1804 = vadd.f32 %v1768, %v1788
        %v1805 = vadd.f32 %v1769, %v1789
        %v1806 = vadd.f32 %v1770, %v1790
        %v1807 = vadd.f32 %v1771, %v1791
        %v1808 = vadd.f32 %v1772, %v1792
        %v1809 = vadd.f32 %v1773, %v1793
        %v1810 = vadd.f32 %v1774, %v1794
        %v1811 = vadd.f32 %v1775, %v1795
        %v1812 = vadd.f32 %v1776, %v1796
        %v1813 = vadd.f32 %v1777, %v1797
        %v1814 = vadd.f32 %v1778, %v1798
        %v1815 = vadd.f32 %v1779, %v1799
        %v1816 = vlaneseq
        %v1817 = vshrl.u32 %v1816, 7
        %v1818 = vsub.s32 1, %v1817
        %v1819 = vrot.slane %v1605, %v1818
        %v1820 = vmul.f32 %v1587, %v1819
        %v1821 = vmul.f32 %v1588, %v1819
        %v1822 = vmul.f32 %v1589, %v1819
        %v1823 = vmul.f32 %v1590, %v1819
        %v1824 = vmul.f32 %v1591, %v1819
        %v1825 = vmul.f32 %v1592, %v1819
        %v1826 = vmul.f32 %v1593, %v1819
        %v1827 = vmul.f32 %v1594, %v1819
        %v1828 = vmul.f32 %v1595, %v1819
        %v1829 = vmul.f32 %v1596, %v1819
        %v1830 = vmul.f32 %v1597, %v1819
        %v1831 = vmul.f32 %v1598, %v1819
        %v1832 = vmul.f32 %v1599, %v1819
        %v1833 = vmul.f32 %v1600, %v1819
        %v1834 = vmul.f32 %v1601, %v1819
        %v1835 = vmul.f32 %v1602, %v1819
        %v1836 = vadd.f32 %v1800, %v1820
        %v1837 = vadd.f32 %v1801, %v1821
        %v1838 = vadd.f32 %v1802, %v1822
        %v1839 = vadd.f32 %v1803, %v1823
        %v1840 = vadd.f32 %v1804, %v1824
        %v1841 = vadd.f32 %v1805, %v1825
        %v1842 = vadd.f32 %v1806, %v1826
        %v1843 = vadd.f32 %v1807, %v1827
        %v1844 = vadd.f32 %v1808, %v1828
        %v1845 = vadd.f32 %v1809, %v1829
        %v1846 = vadd.f32 %v1810, %v1830
        %v1847 = vadd.f32 %v1811, %v1831
        %v1848 = vadd.f32 %v1812, %v1832
        %v1849 = vadd.f32 %v1813, %v1833
        %v1850 = vadd.f32 %v1814, %v1834
        %v1851 = vadd.f32 %v1815, %v1835
        %v1852 = vrot.slane %v1583, 1
        %v1853 = vrot.slane %v1585, 1
        %v1854 = vrot.slane %v1587, 1
        %v1855 = vrot.slane %v1589, 1
        %v1856 = vrot.slane %v1591, 1
        %v1857 = vrot.slane %v1593, 1
        %v1858 = vrot.slane %v1595, 1
        %v1859 = vrot.slane %v1597, 1
        %v1860 = vrot.slane %v1599, 1
        %v1861 = vrot.slane %v1601, 1
        %v1862 = vrot.slane %v1584, 1
        %v1863 = vrot.slane %v1586, 1
        %v1864 = vrot.slane %v1588, 1
        %v1865 = vrot.slane %v1590, 1
        %v1866 = vrot.slane %v1592, 1
        %v1867 = vrot.slane %v1594, 1
        %v1868 = vrot.slane %v1596, 1
        %v1869 = vrot.slane %v1598, 1
        %v1870 = vrot.slane %v1600, 1
        %v1871 = vrot.slane %v1602, 1
        %v1872 = vsel %vm1147, %v1852, %v1862
        %v1873 = vsel %vm1147, %v1853, %v1863
        %v1874 = vsel %vm1147, %v1854, %v1864
        %v1875 = vsel %vm1147, %v1855, %v1865
        %v1876 = vsel %vm1147, %v1856, %v1866
        %v1877 = vsel %vm1147, %v1857, %v1867
        %v1878 = vsel %vm1147, %v1858, %v1868
        %v1879 = vsel %vm1147, %v1859, %v1869
        %v1880 = vsel %vm1147, %v1860, %v1870
        %v1881 = vsel %vm1147, %v1861, %v1871
        %v1882 = vsel %vm1147, %v1862, %v1852
        %v1883 = vsel %vm1147, %v1863, %v1853
        %v1884 = vsel %vm1147, %v1864, %v1854
        %v1885 = vsel %vm1147, %v1865, %v1855
        %v1886 = vsel %vm1147, %v1866, %v1856
        %v1887 = vsel %vm1147, %v1867, %v1857
        %v1888 = vsel %vm1147, %v1868, %v1858
        %v1889 = vsel %vm1147, %v1869, %v1859
        %v1890 = vsel %vm1147, %v1870, %v1860
        %v1891 = vsel %vm1147, %v1871, %v1861
        %v1892 = vlaneseq
        %v1893 = vshrl.u32 %v1892, 7
        %v1894 = vsub.s32 2, %v1893
        %v1895 = vrot.slane %v1603, %v1894
        %v1896 = vmul.f32 %v1895, %v822
        %v1897 = vmul.f32 %v1895, %v823
        %v1898 = vmul.f32 %v1872, %v1896
        %v1899 = vmul.f32 %v1882, %v1897
        %v1900 = vmul.f32 %v1873, %v1896
        %v1901 = vmul.f32 %v1883, %v1897
        %v1902 = vmul.f32 %v1874, %v1896
        %v1903 = vmul.f32 %v1884, %v1897
        %v1904 = vmul.f32 %v1875, %v1896
        %v1905 = vmul.f32 %v1885, %v1897
        %v1906 = vmul.f32 %v1876, %v1896
        %v1907 = vmul.f32 %v1886, %v1897
        %v1908 = vmul.f32 %v1877, %v1896
        %v1909 = vmul.f32 %v1887, %v1897
        %v1910 = vmul.f32 %v1878, %v1896
        %v1911 = vmul.f32 %v1888, %v1897
        %v1912 = vmul.f32 %v1879, %v1896
        %v1913 = vmul.f32 %v1889, %v1897
        %v1914 = vadd.f32 %v1836, %v1898
        %v1915 = vadd.f32 %v1837, %v1899
        %v1916 = vadd.f32 %v1838, %v1900
        %v1917 = vadd.f32 %v1839, %v1901
        %v1918 = vadd.f32 %v1840, %v1902
        %v1919 = vadd.f32 %v1841, %v1903
        %v1920 = vadd.f32 %v1842, %v1904
        %v1921 = vadd.f32 %v1843, %v1905
        %v1922 = vadd.f32 %v1844, %v1906
        %v1923 = vadd.f32 %v1845, %v1907
        %v1924 = vadd.f32 %v1846, %v1908
        %v1925 = vadd.f32 %v1847, %v1909
        %v1926 = vadd.f32 %v1848, %v1910
        %v1927 = vadd.f32 %v1849, %v1911
        %v1928 = vadd.f32 %v1850, %v1912
        %v1929 = vadd.f32 %v1851, %v1913
        %v1930 = vlaneseq
        %v1931 = vshrl.u32 %v1930, 7
        %v1932 = vsub.s32 2, %v1931
        %v1933 = vrot.slane %v1604, %v1932
        %v1934 = vmul.f32 %v1933, %v822
        %v1935 = vmul.f32 %v1933, %v823
        %v1936 = vmul.f32 %v1873, %v1934
        %v1937 = vmul.f32 %v1883, %v1935
        %v1938 = vmul.f32 %v1874, %v1934
        %v1939 = vmul.f32 %v1884, %v1935
        %v1940 = vmul.f32 %v1875, %v1934
        %v1941 = vmul.f32 %v1885, %v1935
        %v1942 = vmul.f32 %v1876, %v1934
        %v1943 = vmul.f32 %v1886, %v1935
        %v1944 = vmul.f32 %v1877, %v1934
        %v1945 = vmul.f32 %v1887, %v1935
        %v1946 = vmul.f32 %v1878, %v1934
        %v1947 = vmul.f32 %v1888, %v1935
        %v1948 = vmul.f32 %v1879, %v1934
        %v1949 = vmul.f32 %v1889, %v1935
        %v1950 = vmul.f32 %v1880, %v1934
        %v1951 = vmul.f32 %v1890, %v1935
        %v1952 = vadd.f32 %v1914, %v1936
        %v1953 = vadd.f32 %v1915, %v1937
        %v1954 = vadd.f32 %v1916, %v1938
        %v1955 = vadd.f32 %v1917, %v1939
        %v1956 = vadd.f32 %v1918, %v1940
        %v1957 = vadd.f32 %v1919, %v1941
        %v1958 = vadd.f32 %v1920, %v1942
        %v1959 = vadd.f32 %v1921, %v1943
        %v1960 = vadd.f32 %v1922, %v1944
        %v1961 = vadd.f32 %v1923, %v1945
        %v1962 = vadd.f32 %v1924, %v1946
        %v1963 = vadd.f32 %v1925, %v1947
        %v1964 = vadd.f32 %v1926, %v1948
        %v1965 = vadd.f32 %v1927, %v1949
        %v1966 = vadd.f32 %v1928, %v1950
        %v1967 = vadd.f32 %v1929, %v1951
        %v1968 = vlaneseq
        %v1969 = vshrl.u32 %v1968, 7
        %v1970 = vsub.s32 2, %v1969
        %v1971 = vrot.slane %v1605, %v1970
        %v1972 = vmul.f32 %v1971, %v822
        %v1973 = vmul.f32 %v1971, %v823
        %v1974 = vmul.f32 %v1874, %v1972
        %v1975 = vmul.f32 %v1884, %v1973
        %v1976 = vmul.f32 %v1875, %v1972
        %v1977 = vmul.f32 %v1885, %v1973
        %v1978 = vmul.f32 %v1876, %v1972
        %v1979 = vmul.f32 %v1886, %v1973
        %v1980 = vmul.f32 %v1877, %v1972
        %v1981 = vmul.f32 %v1887, %v1973
        %v1982 = vmul.f32 %v1878, %v1972
        %v1983 = vmul.f32 %v1888, %v1973
        %v1984 = vmul.f32 %v1879, %v1972
        %v1985 = vmul.f32 %v1889, %v1973
        %v1986 = vmul.f32 %v1880, %v1972
        %v1987 = vmul.f32 %v1890, %v1973
        %v1988 = vmul.f32 %v1881, %v1972
        %v1989 = vmul.f32 %v1891, %v1973
        %v1990 = vadd.f32 %v1952, %v1974
        %v1991 = vadd.f32 %v1953, %v1975
        %v1992 = vadd.f32 %v1954, %v1976
        %v1993 = vadd.f32 %v1955, %v1977
        %v1994 = vadd.f32 %v1956, %v1978
        %v1995 = vadd.f32 %v1957, %v1979
        %v1996 = vadd.f32 %v1958, %v1980
        %v1997 = vadd.f32 %v1959, %v1981
        %v1998 = vadd.f32 %v1960, %v1982
        %v1999 = vadd.f32 %v1961, %v1983
        %v2000 = vadd.f32 %v1962, %v1984
        %v2001 = vadd.f32 %v1963, %v1985
        %v2002 = vadd.f32 %v1964, %v1986
        %v2003 = vadd.f32 %v1965, %v1987
        %v2004 = vadd.f32 %v1966, %v1988
        %v2005 = vadd.f32 %v1967, %v1989
        %v2006 = vld [vmem:[%s10] sm:$0x1]
        %v2008 = vlaneseq
        %v2009 = vshrl.u32 %v2008, 7
        %v2010 = vsub.s32 0, %v2009
        %v2011 = vrot.slane %v2006, %v2010
        %v2013 = vadd.f32 %v1990, %v2011
        %v2014 = vadd.f32 %v1991, %v2011
        %v2015 = vadd.f32 %v1992, %v2011
        %v2016 = vadd.f32 %v1993, %v2011
        %v2017 = vadd.f32 %v1994, %v2011
        %v2018 = vadd.f32 %v1995, %v2011
        %v2019 = vadd.f32 %v1996, %v2011
        %v2020 = vadd.f32 %v1997, %v2011
        %v2021 = vadd.f32 %v1998, %v2011
        %v2022 = vadd.f32 %v1999, %v2011
        %v2023 = vadd.f32 %v2000, %v2011
        %v2024 = vadd.f32 %v2001, %v2011
        %v2025 = vadd.f32 %v2002, %v2011
        %v2026 = vadd.f32 %v2003, %v2011
        %v2027 = vadd.f32 %v2004, %v2011
        %v2028 = vadd.f32 %v2005, %v2011
        %v2029 = vpack.c.bf16 %v2014, %v2013
        %v2030 = vpack.c.bf16 %v2016, %v2015
        %v2031 = vpack.c.bf16 %v2018, %v2017
        %v2032 = vpack.c.bf16 %v2020, %v2019
        %v2033 = vpack.c.bf16 %v2022, %v2021
        %v2034 = vpack.c.bf16 %v2024, %v2023
        %v2035 = vpack.c.bf16 %v2026, %v2025
        %v2036 = vpack.c.bf16 %v2028, %v2027
        %v2037 = vld [vmem:[%s11] sm:$0xf]
        %v2038 = vld [vmem:[%s11 + $0x4] sm:$0xf]
        %v2039 = vld [vmem:[%s12] sm:$0x1]
        %v2041 = vlaneseq
        %v2042 = vshrl.u32 %v2041, 7
        %v2043 = vsub.s32 0, %v2042
        %v2044 = vrot.slane %v2039, %v2043
        %v2048 = vunpack.c.l.b16 %v2037
        %v2049 = vunpack.c.l.b16 %v2038
        %v2050 = vpack.c.b16 %v2049, %v2048
        %vm2052 = vcmask 130048
        %v2054 = vsel %vm2052, %v2029, 0
        %v2057 = vsel %vm2052, %v2030, 0
        %v2060 = vsel %vm2052, %v2031, 0
        %v2063 = vsel %vm2052, %v2032, 0
        %v2066 = vsel %vm2052, %v2033, 0
        %v2069 = vsel %vm2052, %v2034, 0
        %v2072 = vsel %vm2052, %v2035, 0
        %v2075 = vsel %vm2052, %v2036, 0
        %2077 = vmatprep.subr.bf16.mxu0 0
        %2078 = vmatpush1.bf16.msra.mxu0 %v2050
        %2079 = vmatprep.subr.bf16.mxu0 0
        %2080 = vmatpush1.bf16.msra.mxu0 0
        %2081 = vmatprep.subr.bf16.mxu0 0
        %2082 = vmatpush1.bf16.msra.mxu0 0
        %2083 = vmatprep.subr.bf16.mxu0 0
        %2084 = vmatpush1.bf16.msra.mxu0 0
        %2085 = vmatprep.subr.bf16.mxu0 0
        %2086 = vmatpush1.bf16.msra.mxu0 0
        %2087 = vmatprep.subr.bf16.mxu0 0
        %2088 = vmatpush1.bf16.msra.mxu0 0
        %2089 = vmatprep.subr.bf16.mxu0 0
        %2090 = vmatpush1.bf16.msra.mxu0 0
        %2091 = vmatprep.subr.bf16.mxu0 0
        %2092 = vmatpush1.bf16.msra.mxu0 0
        %2093 = vmatprep.subr.bf16.mxu0 0
        %2094 = vmatpush1.bf16.msra.mxu0 0
        %2095 = vmatprep.subr.bf16.mxu0 0
        %2096 = vmatpush1.bf16.msra.mxu0 0
        %2097 = vmatprep.subr.bf16.mxu0 0
        %2098 = vmatpush1.bf16.msra.mxu0 0
        %2099 = vmatprep.subr.bf16.mxu0 0
        %2100 = vmatpush1.bf16.msra.mxu0 0
        %2101 = vmatprep.subr.bf16.mxu0 0
        %2102 = vmatpush1.bf16.msra.mxu0 0
        %2103 = vmatprep.subr.bf16.mxu0 0
        %2104 = vmatpush1.bf16.msra.mxu0 0
        %2105 = vmatprep.subr.bf16.mxu0 0
        %2106 = vmatpush1.bf16.msra.mxu0 0
        %2107 = vmatprep.subr.bf16.mxu0 0
        %2108 = vmatpush1.bf16.msra.mxu0 0
        %2109 = vmatprep.mubr.bf16.mxu0 0
        %2110 = vmatmul.mubr.bf16.gmra.mrb[0].mxu0 %v2054
        %v2111 = vpop.f32.mrb[0].mxu0
        %v2112 = vadd.f32 %v2044, %v2111
        %v2113 = vpop.f32.mrb[0].mxu0
        %v2114 = vpop.f32.mrb[0].mxu0
        %v2115 = vadd.f32 %v2044, %v2114
        %v2116 = vpop.f32.mrb[0].mxu0
        %2117 = vmatprep.mubr.bf16.mxu0 0
        %2118 = vmatmul.mubr.bf16.gmra.mrb[0].mxu0 %v2057
        %v2119 = vpop.f32.mrb[0].mxu0
        %v2120 = vadd.f32 %v2044, %v2119
        %v2121 = vpop.f32.mrb[0].mxu0
        %v2122 = vpop.f32.mrb[0].mxu0
        %v2123 = vadd.f32 %v2044, %v2122
        %v2124 = vpop.f32.mrb[0].mxu0
        %2125 = vmatprep.mubr.bf16.mxu0 0
        %2126 = vmatmul.mubr.bf16.gmra.mrb[0].mxu0 %v2060
        %v2127 = vpop.f32.mrb[0].mxu0
        %v2128 = vadd.f32 %v2044, %v2127
        %v2129 = vpop.f32.mrb[0].mxu0
        %v2130 = vpop.f32.mrb[0].mxu0
        %v2131 = vadd.f32 %v2044, %v2130
        %v2132 = vpop.f32.mrb[0].mxu0
        %2133 = vmatprep.mubr.bf16.mxu0 0
        %2134 = vmatmul.mubr.bf16.gmra.mrb[0].mxu0 %v2063
        %v2135 = vpop.f32.mrb[0].mxu0
        %v2136 = vadd.f32 %v2044, %v2135
        %v2137 = vpop.f32.mrb[0].mxu0
        %v2138 = vpop.f32.mrb[0].mxu0
        %v2139 = vadd.f32 %v2044, %v2138
        %v2140 = vpop.f32.mrb[0].mxu0
        %2141 = vmatprep.mubr.bf16.mxu0 0
        %2142 = vmatmul.mubr.bf16.gmra.mrb[0].mxu0 %v2066
        %v2143 = vpop.f32.mrb[0].mxu0
        %v2144 = vadd.f32 %v2044, %v2143
        %v2145 = vpop.f32.mrb[0].mxu0
        %v2146 = vpop.f32.mrb[0].mxu0
        %v2147 = vadd.f32 %v2044, %v2146
        %v2148 = vpop.f32.mrb[0].mxu0
        %2149 = vmatprep.mubr.bf16.mxu0 0
        %2150 = vmatmul.mubr.bf16.gmra.mrb[0].mxu0 %v2069
        %v2151 = vpop.f32.mrb[0].mxu0
        %v2152 = vadd.f32 %v2044, %v2151
        %v2153 = vpop.f32.mrb[0].mxu0
        %v2154 = vpop.f32.mrb[0].mxu0
        %v2155 = vadd.f32 %v2044, %v2154
        %v2156 = vpop.f32.mrb[0].mxu0
        %2157 = vmatprep.mubr.bf16.mxu0 0
        %2158 = vmatmul.mubr.bf16.gmra.mrb[0].mxu0 %v2072
        %v2159 = vpop.f32.mrb[0].mxu0
        %v2160 = vadd.f32 %v2044, %v2159
        %v2161 = vpop.f32.mrb[0].mxu0
        %v2162 = vpop.f32.mrb[0].mxu0
        %v2163 = vadd.f32 %v2044, %v2162
        %v2164 = vpop.f32.mrb[0].mxu0
        %2165 = vmatprep.mubr.bf16.mxu0 0
        %2166 = vmatmul.mubr.bf16.gmra.mrb[0].mxu0 %v2075
        %v2167 = vpop.f32.mrb[0].mxu0
        %v2168 = vadd.f32 %v2044, %v2167
        %v2169 = vpop.f32.mrb[0].mxu0
        %v2170 = vpop.f32.mrb[0].mxu0
        %v2171 = vadd.f32 %v2044, %v2170
        %v2172 = vpop.f32.mrb[0].mxu0
        %2173 = vdwg.mxu0
        %2174 = vst.msk [vmem:[%s645] sm:$0xff] %vm2052, %v2112
        %2175 = vst.msk [vmem:[%s645 + $0x8] sm:$0xff] %vm2052, %v2115
        %2176 = vst.msk [vmem:[%s645 + $0x10] sm:$0xff] %vm2052, %v2120
        %2177 = vst.msk [vmem:[%s645 + $0x18] sm:$0xff] %vm2052, %v2123
        %2178 = vst.msk [vmem:[%s645 + $0x20] sm:$0xff] %vm2052, %v2128
        %2179 = vst.msk [vmem:[%s645 + $0x28] sm:$0xff] %vm2052, %v2131
        %2180 = vst.msk [vmem:[%s645 + $0x30] sm:$0xff] %vm2052, %v2136
        %2181 = vst.msk [vmem:[%s645 + $0x38] sm:$0xff] %vm2052, %v2139
        %2182 = vst.msk [vmem:[%s645 + $0x40] sm:$0xff] %vm2052, %v2144
        %2183 = vst.msk [vmem:[%s645 + $0x48] sm:$0xff] %vm2052, %v2147
        %2184 = vst.msk [vmem:[%s645 + $0x50] sm:$0xff] %vm2052, %v2152
        %2185 = vst.msk [vmem:[%s645 + $0x58] sm:$0xff] %vm2052, %v2155
        %2186 = vst.msk [vmem:[%s645 + $0x60] sm:$0xff] %vm2052, %v2160
        %2187 = vst.msk [vmem:[%s645 + $0x68] sm:$0xff] %vm2052, %v2163
        %2188 = vst.msk [vmem:[%s645 + $0x70] sm:$0xff] %vm2052, %v2168
        %2189 = vst.msk [vmem:[%s645 + $0x78] sm:$0xff] %vm2052, %v2171
        %s2190 = sand.u32 %s391, 1
        %s2191 = scalar_lea.sflag [#allocation3], %s2190
        %s2192 = sand.u32 %s391, 1
        %s2193 = smul.addr %s2192, 128
        %s2194 = scalar_lea.vmem [#allocation2], %s2193
        // Predicated region
        $region73: #{tpu_custom_call.1} parent=71 // pred_check
          %p2195 = pneg %p401
        $region74: #{tpu_custom_call.1} parent=71 // pred_check_branch
          %2197 = sbr.rel (%p2195) target = $region76
        $region75: #{tpu_custom_call.1} parent=71 // pred_region
          %s2198 = smul.u32 8, %s32
          %s2200 = ssub.s32 2048, 2048
          %2201 = vsyncadd %s2191, %s2200
          %s2202 = smul.addr %s2198, 2
          %s2203 = smul.addr %s31, 32
          %s2204 = sadd.s32 %s2202, %s2203
          %s2205 = smul.addr %s2204, 128
          %s2206 = scalar_lea.hbm %s13, %s2205
          %s2207 = sshll.u32 %s2194, 4
          %s2208 = int_to_ptr.vmem [resolvable:$true] %s2207
          %2213 = dma.vmem_to_hbm [thread:$0]  %s2208, 2048, %s2206, %s2191, 128, 128, 8
        $region76: #{tpu_custom_call.1} parent=71 // pred_fallthru
          _
      $region72: #{tpu_custom_call.1} parent=5 // pred_fallthru
        _
      %p2214 = scmp.le.s32.totalorder 2, %s22
      // Predicated region
      $region77: #{tpu_custom_call.1} parent=5 // pred_check
        %p2215 = pneg %p2214
      $region78: #{tpu_custom_call.1} parent=5 // pred_check_branch
        %2217 = sbr.rel (%p2215) target = $region80
      $region79: #{tpu_custom_call.1} parent=5 // pred_region
        %s2218 = ssub.s32 %s22, 2
        // Predicated region
        $region81: #{tpu_custom_call.1} parent=79 // pred_check
          %p2219 = pneg %p407
        $region82: #{tpu_custom_call.1} parent=79 // pred_check_branch
          %2221 = sbr.rel (%p2219) target = $region84
        $region83: #{tpu_custom_call.1} parent=79 // pred_region
          %s2222 = sand.u32 %s392, 1
          %s2223 = scalar_lea.sflag [#allocation3], %s2222
          %s2224 = sand.u32 %s392, 1
          %s2225 = smul.addr %s2224, 128
          %s2226 = scalar_lea.vmem [#allocation2], %s2225
          %2227 = dma.done %s2223, 2048
        $region84: #{tpu_custom_call.1} parent=79 // pred_fallthru
          _
      $region80: #{tpu_custom_call.1} parent=5 // pred_fallthru
        _
    $region6: #{tpu_custom_call.1} parent=1 // loop_footer
      %s26 = sadd.s32 1, %s22
    $region7: #{tpu_custom_call.1} parent=1 // loop_footer_branch
      %21 = sbr.rel target = $region3
    $region8: #{tpu_custom_call.1} parent=1 // loop_exit
      _
    %2228 = vsyncpa [#allocation3], 1
    %s2229 = scalar_lea.sflag [#allocation3], 1
    %2230 = vsyncpa %s2229, 1

</llo_original>
